<compile_context>
chip_gen: v7x
topology: tpu7x:2x2x1
jax: 0.10.0
libtpu: 0.0.40
codegen_flags: <defaults>
</compile_context>

<pallas_src>
import functools
import math

import jax
import jax.numpy as jnp
from jax.experimental import pallas as pl
from jax.experimental.pallas import tpu as pltpu


# ---------------------------------------------------------------------------
# Kernels
# ---------------------------------------------------------------------------

def _bilstm_recurrence(x_ref, wih_ref, whhf_ref, whhb_ref, b_ref, dec_ref,
                       *, T, B, H):
    """Fused bidirectional LSTM layer over the whole sequence.

    x_ref:    (T*B, D_in)   time-major rows (row = t*B + b)
    wih_ref:  (D_in, 8H)    columns: [fwd i|f|g|o  |  bwd i|f|g|o]
    whhf_ref: (H, 4H)       forward  recurrent weight (pre-transposed)
    whhb_ref: (H, 4H)       backward recurrent weight (pre-transposed)
    b_ref:    (1, 8H)       (b_ih + b_hh), fwd block then bwd block
    dec_ref:  (T*B, 2H)     output: [h_fwd | h_bwd] per (t, b) row
    """
    # ---- hoisted: one big input projection for every timestep & both dirs ----
    xproj = (jnp.dot(x_ref[...], wih_ref[...],
                     preferred_element_type=jnp.float32)
             + b_ref[...])                                    # (T*B, 8H)
    whh_f = whhf_ref[...]                                     # (H, 4H)
    whh_b = whhb_ref[...]                                     # (H, 4H)

    h_f = c_f = h_b = c_b = None

    # Statically unrolled serial recurrence; only h_{t-1} @ W_hh stays inside.
    for s in range(T):
        tf = s              # forward direction time index
        tb = T - 1 - s      # backward direction time index

        xg_f = xproj[tf * B:(tf + 1) * B, 0:4 * H]            # (B, 4H)
        xg_b = xproj[tb * B:(tb + 1) * B, 4 * H:8 * H]        # (B, 4H)

        if s == 0:          # h_0 == 0  ->  skip the recurrent matmuls
            g_f, g_b = xg_f, xg_b
        else:
            g_f = xg_f + jnp.dot(h_f, whh_f,
                                 preferred_element_type=jnp.float32)
            g_b = xg_b + jnp.dot(h_b, whh_b,
                                 preferred_element_type=jnp.float32)

        # PyTorch gate order: i, f, g, o
        i_f = jax.nn.sigmoid(g_f[:, 0 * H:1 * H])
        i_b = jax.nn.sigmoid(g_b[:, 0 * H:1 * H])
        f_f = jax.nn.sigmoid(g_f[:, 1 * H:2 * H])
        f_b = jax.nn.sigmoid(g_b[:, 1 * H:2 * H])
        gg_f = jnp.tanh(g_f[:, 2 * H:3 * H])
        gg_b = jnp.tanh(g_b[:, 2 * H:3 * H])
        o_f = jax.nn.sigmoid(g_f[:, 3 * H:4 * H])
        o_b = jax.nn.sigmoid(g_b[:, 3 * H:4 * H])

        if s == 0:          # c_0 == 0
            c_f = i_f * gg_f
            c_b = i_b * gg_b
        else:
            c_f = f_f * c_f + i_f * gg_f
            c_b = f_b * c_b + i_b * gg_b

        h_f = o_f * jnp.tanh(c_f)
        h_b = o_b * jnp.tanh(c_b)

        # decoder_out layout = [h_fwd | h_bwd] (same as torch bidirectional concat)
        dec_ref[tf * B:(tf + 1) * B, 0:H] = h_f
        dec_ref[tb * B:(tb + 1) * B, H:2 * H] = h_b


def _bilstm_fc_kernel(x_ref, wih_ref, whhf_ref, whhb_ref, b_ref,
                      wfc_ref, bfc_ref, out_ref, dec_scr, *, T, B, H):
    """Last BiLSTM layer fused with the final Linear (2H -> out_dim)."""
    _bilstm_recurrence(x_ref, wih_ref, whhf_ref, whhb_ref, b_ref, dec_scr,
                       T=T, B=B, H=H)
    out_ref[...] = (jnp.dot(dec_scr[...], wfc_ref[...],
                            preferred_element_type=jnp.float32)
                    + bfc_ref[...]).astype(out_ref.dtype)


def _bilstm_kernel(x_ref, wih_ref, whhf_ref, whhb_ref, b_ref, out_ref,
                   *, T, B, H):
    """Intermediate BiLSTM layer (n_layers > 1): emits the (T*B, 2H) sequence."""
    _bilstm_recurrence(x_ref, wih_ref, whhf_ref, whhb_ref, b_ref, out_ref,
                       T=T, B=B, H=H)


# ---------------------------------------------------------------------------
# Model wrapper
# ---------------------------------------------------------------------------

class ReconstructionModelPallas:
    """JAX/Pallas port of ReconstructionModel (inference semantics)."""

    def __init__(self, window_size, in_dim, hid_dim, out_dim, n_layers,
                 dropout, key):
        self.window_size = window_size
        self.in_dim = in_dim
        self.hid_dim = hid_dim
        self.out_dim = out_dim
        self.n_layers = n_layers
        # TODO(synk): nn.LSTM inter-layer dropout is training-only; inference here.
        del dropout

        k = 1.0 / math.sqrt(hid_dim)

        def unif(kk, shape, bound):
            return jax.random.uniform(kk, shape, jnp.float32, -bound, bound)

        keys = jax.random.split(key, n_layers * 8 + 2)
        ki = 0
        self.layers = []
        for layer in range(n_layers):
            d_in = in_dim if layer == 0 else 2 * hid_dim
            # torch-layout params (4H, D) / (4H, H) / (4H,), gate order i,f,g,o
            w_ih_f = unif(keys[ki + 0], (4 * hid_dim, d_in), k)
            w_hh_f = unif(keys[ki + 1], (4 * hid_dim, hid_dim), k)
            b_ih_f = unif(keys[ki + 2], (4 * hid_dim,), k)
            b_hh_f = unif(keys[ki + 3], (4 * hid_dim,), k)
            w_ih_b = unif(keys[ki + 4], (4 * hid_dim, d_in), k)
            w_hh_b = unif(keys[ki + 5], (4 * hid_dim, hid_dim), k)
            b_ih_b = unif(keys[ki + 6], (4 * hid_dim,), k)
            b_hh_b = unif(keys[ki + 7], (4 * hid_dim,), k)
            ki += 8
            # Pre-transpose / pre-combine ONCE at init (MXU-ready layout).
            self.layers.append({
                "wih":   jnp.concatenate([w_ih_f.T, w_ih_b.T], axis=1),   # (D, 8H)
                "whh_f": jnp.transpose(w_hh_f),                            # (H, 4H)
                "whh_b": jnp.transpose(w_hh_b),                            # (H, 4H)
                "b":     jnp.concatenate([b_ih_f + b_hh_f,
                                          b_ih_b + b_hh_b]
                                         ).reshape(1, 8 * hid_dim),        # (1, 8H)
            })

        kf = 1.0 / math.sqrt(2 * hid_dim)
        fc_w = unif(keys[ki], (out_dim, 2 * hid_dim), kf)
        fc_b = unif(keys[ki + 1], (out_dim,), kf)
        self.wfc = jnp.transpose(fc_w)                 # (2H, out_dim)
        self.bfc = fc_b.reshape(1, out_dim)            # (1, out_dim)

    def __call__(self, x):
        # x: (B, in_dim)
        B = x.shape[0]
        T = self.window_size
        H = self.hid_dim

        # exact repeat_interleave(dim=1).view(B, T, -1) semantics, then time-major
        h_end_rep = jnp.repeat(x, T, axis=1).reshape(B, T, -1)       # (B, T, D)
        seq = jnp.transpose(h_end_rep, (1, 0, 2)).reshape(T * B, -1)  # (T*B, D)

        for layer in range(self.n_layers):
            p = self.layers[layer]
            last = layer == self.n_layers - 1
            if last:
                kern = functools.partial(_bilstm_fc_kernel, T=T, B=B, H=H)
                out = pl.pallas_call(
                    kern,
                    out_shape=jax.ShapeDtypeStruct((T * B, self.out_dim),
                                                   jnp.float32),
                    scratch_shapes=[pltpu.VMEM((T * B, 2 * H), jnp.float32)],
                )(seq, p["wih"], p["whh_f"], p["whh_b"], p["b"],
                  self.wfc, self.bfc)
                # (T*B, O) -> (B, T, O); tiny wrapper-side relayout only.
                return jnp.transpose(out.reshape(T, B, self.out_dim), (1, 0, 2))
            else:
                kern = functools.partial(_bilstm_kernel, T=T, B=B, H=H)
                seq = pl.pallas_call(
                    kern,
                    out_shape=jax.ShapeDtypeStruct((T * B, 2 * H), jnp.float32),
                )(seq, p["wih"], p["whh_f"], p["whh_b"], p["b"])


# ---------------------------------------------------------------------------
# Demo
# ---------------------------------------------------------------------------

if __name__ == "__main__":
    window_size = 8
    in_dim = 16
    hid_dim = 32
    out_dim = 16
    n_layers = 1
    dropout = 0.0
    batch = 2

    key = jax.random.PRNGKey(0)
    k_model, k_x = jax.random.split(key)

    model = ReconstructionModelPallas(window_size, in_dim, hid_dim, out_dim,
                                      n_layers, dropout, k_model)

    x = jax.random.normal(k_x, (batch, in_dim), dtype=jnp.float32)

    fwd = jax.jit(lambda inp: model(inp))
    out = jax.block_until_ready(fwd(x))

    assert out.shape == (batch, window_size, out_dim), out.shape
    assert bool(jnp.all(jnp.isfinite(out)))
    print("KERNEL_OK")
</pallas_src>

<mosaic_0001>
module attributes {stable_mosaic.version = 11 : i64} {
  func.func @_bilstm_fc_kernel(%arg0: memref<16x16xf32, #tpu.memory_space<vmem>>, %arg1: memref<16x256xf32, #tpu.memory_space<vmem>>, %arg2: memref<32x128xf32, #tpu.memory_space<vmem>>, %arg3: memref<32x128xf32, #tpu.memory_space<vmem>>, %arg4: memref<1x256xf32, #tpu.memory_space<vmem>>, %arg5: memref<64x16xf32, #tpu.memory_space<vmem>>, %arg6: memref<1x16xf32, #tpu.memory_space<vmem>>, %arg7: memref<16x16xf32, #tpu.memory_space<vmem>>, %arg8: memref<16x64xf32, #tpu.memory_space<vmem>>) attributes {dimension_semantics = [], scalar_prefetch = 0 : i64, scratch_operands = 1 : i64, tpu.core_type = #tpu.core_type<tc>} {
    %c0 = arith.constant 0 : index
    %c0_0 = arith.constant 0 : index
    %0 = vector.load %arg0[%c0, %c0_0] : memref<16x16xf32, #tpu.memory_space<vmem>>, vector<16x16xf32>
    %c0_1 = arith.constant 0 : index
    %c0_2 = arith.constant 0 : index
    %1 = vector.load %arg1[%c0_1, %c0_2] : memref<16x256xf32, #tpu.memory_space<vmem>>, vector<16x256xf32>
    %cst = arith.constant dense<0.000000e+00> : vector<16x256xf32>
    %2 = tpu.matmul %0, %1, %cst {dimension_numbers = #tpu.dot_dimension_numbers<[1], [0], [0], [1], [0, 0, 1, 1], [], []>} : vector<16x16xf32>, vector<16x256xf32>, vector<16x256xf32> -> vector<16x256xf32>
    %c0_3 = arith.constant 0 : index
    %c0_4 = arith.constant 0 : index
    %3 = vector.load %arg4[%c0_3, %c0_4] : memref<1x256xf32, #tpu.memory_space<vmem>>, vector<1x256xf32>
    %4 = vector.broadcast %3 : vector<1x256xf32> to vector<16x256xf32>
    %5 = arith.addf %2, %4 : vector<16x256xf32>
    %c0_5 = arith.constant 0 : index
    %c0_6 = arith.constant 0 : index
    %6 = vector.load %arg2[%c0_5, %c0_6] : memref<32x128xf32, #tpu.memory_space<vmem>>, vector<32x128xf32>
    %c0_7 = arith.constant 0 : index
    %c0_8 = arith.constant 0 : index
    %7 = vector.load %arg3[%c0_7, %c0_8] : memref<32x128xf32, #tpu.memory_space<vmem>>, vector<32x128xf32>
    %8 = vector.extract_strided_slice %5 {offsets = [0, 0], sizes = [2, 128], strides = [1, 1]} : vector<16x256xf32> to vector<2x128xf32>
    %9 = vector.extract_strided_slice %5 {offsets = [14, 128], sizes = [2, 128], strides = [1, 1]} : vector<16x256xf32> to vector<2x128xf32>
    %10 = vector.extract_strided_slice %8 {offsets = [0, 0], sizes = [2, 32], strides = [1, 1]} : vector<2x128xf32> to vector<2x32xf32>
    %11 = arith.negf %10 : vector<2x32xf32>
    %12 = math.exp %11 : vector<2x32xf32>
    %cst_9 = arith.constant 1.000000e+00 : f32
    %13 = vector.broadcast %cst_9 : f32 to vector<2x32xf32>
    %14 = arith.addf %13, %12 : vector<2x32xf32>
    %15 = arith.divf %13, %14 : vector<2x32xf32>
    %16 = vector.extract_strided_slice %9 {offsets = [0, 0], sizes = [2, 32], strides = [1, 1]} : vector<2x128xf32> to vector<2x32xf32>
    %17 = arith.negf %16 : vector<2x32xf32>
    %18 = math.exp %17 : vector<2x32xf32>
    %cst_10 = arith.constant 1.000000e+00 : f32
    %19 = vector.broadcast %cst_10 : f32 to vector<2x32xf32>
    %20 = arith.addf %19, %18 : vector<2x32xf32>
    %21 = arith.divf %19, %20 : vector<2x32xf32>
    %22 = vector.extract_strided_slice %8 {offsets = [0, 64], sizes = [2, 32], strides = [1, 1]} : vector<2x128xf32> to vector<2x32xf32>
    %23 = math.tanh %22 : vector<2x32xf32>
    %24 = vector.extract_strided_slice %9 {offsets = [0, 64], sizes = [2, 32], strides = [1, 1]} : vector<2x128xf32> to vector<2x32xf32>
    %25 = math.tanh %24 : vector<2x32xf32>
    %26 = vector.extract_strided_slice %8 {offsets = [0, 96], sizes = [2, 32], strides = [1, 1]} : vector<2x128xf32> to vector<2x32xf32>
    %27 = arith.negf %26 : vector<2x32xf32>
    %28 = math.exp %27 : vector<2x32xf32>
    %cst_11 = arith.constant 1.000000e+00 : f32
    %29 = vector.broadcast %cst_11 : f32 to vector<2x32xf32>
    %30 = arith.addf %29, %28 : vector<2x32xf32>
    %31 = arith.divf %29, %30 : vector<2x32xf32>
    %32 = vector.extract_strided_slice %9 {offsets = [0, 96], sizes = [2, 32], strides = [1, 1]} : vector<2x128xf32> to vector<2x32xf32>
    %33 = arith.negf %32 : vector<2x32xf32>
    %34 = math.exp %33 : vector<2x32xf32>
    %cst_12 = arith.constant 1.000000e+00 : f32
    %35 = vector.broadcast %cst_12 : f32 to vector<2x32xf32>
    %36 = arith.addf %35, %34 : vector<2x32xf32>
    %37 = arith.divf %35, %36 : vector<2x32xf32>
    %38 = arith.mulf %15, %23 : vector<2x32xf32>
    %39 = arith.mulf %21, %25 : vector<2x32xf32>
    %40 = math.tanh %38 : vector<2x32xf32>
    %41 = arith.mulf %31, %40 : vector<2x32xf32>
    %42 = math.tanh %39 : vector<2x32xf32>
    %43 = arith.mulf %37, %42 : vector<2x32xf32>
    %c0_13 = arith.constant 0 : index
    %c0_14 = arith.constant 0 : index
    %44 = vector.load %arg8[%c0_13, %c0_14] : memref<16x64xf32, #tpu.memory_space<vmem>>, vector<2x32xf32>
    tpu.vector_store %arg8[%c0_13, %c0_14], %41 {strides = array<i32>} : memref<16x64xf32, #tpu.memory_space<vmem>>, vector<2x32xf32>,
    %c14 = arith.constant 14 : index
    %c32 = arith.constant 32 : index
    %45 = vector.load %arg8[%c14, %c32] : memref<16x64xf32, #tpu.memory_space<vmem>>, vector<2x32xf32>
    tpu.vector_store %arg8[%c14, %c32], %43 {strides = array<i32>} : memref<16x64xf32, #tpu.memory_space<vmem>>, vector<2x32xf32>,
    %46 = vector.extract_strided_slice %5 {offsets = [2, 0], sizes = [2, 128], strides = [1, 1]} : vector<16x256xf32> to vector<2x128xf32>
    %47 = vector.extract_strided_slice %5 {offsets = [12, 128], sizes = [2, 128], strides = [1, 1]} : vector<16x256xf32> to vector<2x128xf32>
    %cst_15 = arith.constant dense<0.000000e+00> : vector<2x128xf32>
    %48 = tpu.matmul %41, %6, %cst_15 {dimension_numbers = #tpu.dot_dimension_numbers<[1], [0], [0], [1], [0, 0, 1, 1], [], []>} : vector<2x32xf32>, vector<32x128xf32>, vector<2x128xf32> -> vector<2x128xf32>
    %49 = arith.addf %46, %48 : vector<2x128xf32>
    %cst_16 = arith.constant dense<0.000000e+00> : vector<2x128xf32>
    %50 = tpu.matmul %43, %7, %cst_16 {dimension_numbers = #tpu.dot_dimension_numbers<[1], [0], [0], [1], [0, 0, 1, 1], [], []>} : vector<2x32xf32>, vector<32x128xf32>, vector<2x128xf32> -> vector<2x128xf32>
    %51 = arith.addf %47, %50 : vector<2x128xf32>
    %52 = vector.extract_strided_slice %49 {offsets = [0, 0], sizes = [2, 32], strides = [1, 1]} : vector<2x128xf32> to vector<2x32xf32>
    %53 = arith.negf %52 : vector<2x32xf32>
    %54 = math.exp %53 : vector<2x32xf32>
    %cst_17 = arith.constant 1.000000e+00 : f32
    %55 = vector.broadcast %cst_17 : f32 to vector<2x32xf32>
    %56 = arith.addf %55, %54 : vector<2x32xf32>
    %57 = arith.divf %55, %56 : vector<2x32xf32>
    %58 = vector.extract_strided_slice %51 {offsets = [0, 0], sizes = [2, 32], strides = [1, 1]} : vector<2x128xf32> to vector<2x32xf32>
    %59 = arith.negf %58 : vector<2x32xf32>
    %60 = math.exp %59 : vector<2x32xf32>
    %cst_18 = arith.constant 1.000000e+00 : f32
    %61 = vector.broadcast %cst_18 : f32 to vector<2x32xf32>
    %62 = arith.addf %61, %60 : vector<2x32xf32>
    %63 = arith.divf %61, %62 : vector<2x32xf32>
    %64 = vector.extract_strided_slice %49 {offsets = [0, 32], sizes = [2, 32], strides = [1, 1]} : vector<2x128xf32> to vector<2x32xf32>
    %65 = arith.negf %64 : vector<2x32xf32>
    %66 = math.exp %65 : vector<2x32xf32>
    %cst_19 = arith.constant 1.000000e+00 : f32
    %67 = vector.broadcast %cst_19 : f32 to vector<2x32xf32>
    %68 = arith.addf %67, %66 : vector<2x32xf32>
    %69 = arith.divf %67, %68 : vector<2x32xf32>
    %70 = vector.extract_strided_slice %51 {offsets = [0, 32], sizes = [2, 32], strides = [1, 1]} : vector<2x128xf32> to vector<2x32xf32>
    %71 = arith.negf %70 : vector<2x32xf32>
    %72 = math.exp %71 : vector<2x32xf32>
    %cst_20 = arith.constant 1.000000e+00 : f32
    %73 = vector.broadcast %cst_20 : f32 to vector<2x32xf32>
    %74 = arith.addf %73, %72 : vector<2x32xf32>
    %75 = arith.divf %73, %74 : vector<2x32xf32>
    %76 = vector.extract_strided_slice %49 {offsets = [0, 64], sizes = [2, 32], strides = [1, 1]} : vector<2x128xf32> to vector<2x32xf32>
    %77 = math.tanh %76 : vector<2x32xf32>
    %78 = vector.extract_strided_slice %51 {offsets = [0, 64], sizes = [2, 32], strides = [1, 1]} : vector<2x128xf32> to vector<2x32xf32>
    %79 = math.tanh %78 : vector<2x32xf32>
    %80 = vector.extract_strided_slice %49 {offsets = [0, 96], sizes = [2, 32], strides = [1, 1]} : vector<2x128xf32> to vector<2x32xf32>
    %81 = arith.negf %80 : vector<2x32xf32>
    %82 = math.exp %81 : vector<2x32xf32>
    %cst_21 = arith.constant 1.000000e+00 : f32
    %83 = vector.broadcast %cst_21 : f32 to vector<2x32xf32>
    %84 = arith.addf %83, %82 : vector<2x32xf32>
    %85 = arith.divf %83, %84 : vector<2x32xf32>
    %86 = vector.extract_strided_slice %51 {offsets = [0, 96], sizes = [2, 32], strides = [1, 1]} : vector<2x128xf32> to vector<2x32xf32>
    %87 = arith.negf %86 : vector<2x32xf32>
    %88 = math.exp %87 : vector<2x32xf32>
    %cst_22 = arith.constant 1.000000e+00 : f32
    %89 = vector.broadcast %cst_22 : f32 to vector<2x32xf32>
    %90 = arith.addf %89, %88 : vector<2x32xf32>
    %91 = arith.divf %89, %90 : vector<2x32xf32>
    %92 = arith.mulf %69, %38 : vector<2x32xf32>
    %93 = arith.mulf %57, %77 : vector<2x32xf32>
    %94 = arith.addf %92, %93 : vector<2x32xf32>
    %95 = arith.mulf %75, %39 : vector<2x32xf32>
    %96 = arith.mulf %63, %79 : vector<2x32xf32>
    %97 = arith.addf %95, %96 : vector<2x32xf32>
    %98 = math.tanh %94 : vector<2x32xf32>
    %99 = arith.mulf %85, %98 : vector<2x32xf32>
    %100 = math.tanh %97 : vector<2x32xf32>
    %101 = arith.mulf %91, %100 : vector<2x32xf32>
    %c2 = arith.constant 2 : index
    %c0_23 = arith.constant 0 : index
    %102 = vector.load %arg8[%c2, %c0_23] : memref<16x64xf32, #tpu.memory_space<vmem>>, vector<2x32xf32>
    tpu.vector_store %arg8[%c2, %c0_23], %99 {strides = array<i32>} : memref<16x64xf32, #tpu.memory_space<vmem>>, vector<2x32xf32>,
    %c12 = arith.constant 12 : index
    %c32_24 = arith.constant 32 : index
    %103 = vector.load %arg8[%c12, %c32_24] : memref<16x64xf32, #tpu.memory_space<vmem>>, vector<2x32xf32>
    tpu.vector_store %arg8[%c12, %c32_24], %101 {strides = array<i32>} : memref<16x64xf32, #tpu.memory_space<vmem>>, vector<2x32xf32>,
    %104 = vector.extract_strided_slice %5 {offsets = [4, 0], sizes = [2, 128], strides = [1, 1]} : vector<16x256xf32> to vector<2x128xf32>
    %105 = vector.extract_strided_slice %5 {offsets = [10, 128], sizes = [2, 128], strides = [1, 1]} : vector<16x256xf32> to vector<2x128xf32>
    %cst_25 = arith.constant dense<0.000000e+00> : vector<2x128xf32>
    %106 = tpu.matmul %99, %6, %cst_25 {dimension_numbers = #tpu.dot_dimension_numbers<[1], [0], [0], [1], [0, 0, 1, 1], [], []>} : vector<2x32xf32>, vector<32x128xf32>, vector<2x128xf32> -> vector<2x128xf32>
    %107 = arith.addf %104, %106 : vector<2x128xf32>
    %cst_26 = arith.constant dense<0.000000e+00> : vector<2x128xf32>
    %108 = tpu.matmul %101, %7, %cst_26 {dimension_numbers = #tpu.dot_dimension_numbers<[1], [0], [0], [1], [0, 0, 1, 1], [], []>} : vector<2x32xf32>, vector<32x128xf32>, vector<2x128xf32> -> vector<2x128xf32>
    %109 = arith.addf %105, %108 : vector<2x128xf32>
    %110 = vector.extract_strided_slice %107 {offsets = [0, 0], sizes = [2, 32], strides = [1, 1]} : vector<2x128xf32> to vector<2x32xf32>
    %111 = arith.negf %110 : vector<2x32xf32>
    %112 = math.exp %111 : vector<2x32xf32>
    %cst_27 = arith.constant 1.000000e+00 : f32
    %113 = vector.broadcast %cst_27 : f32 to vector<2x32xf32>
    %114 = arith.addf %113, %112 : vector<2x32xf32>
    %115 = arith.divf %113, %114 : vector<2x32xf32>
    %116 = vector.extract_strided_slice %109 {offsets = [0, 0], sizes = [2, 32], strides = [1, 1]} : vector<2x128xf32> to vector<2x32xf32>
    %117 = arith.negf %116 : vector<2x32xf32>
    %118 = math.exp %117 : vector<2x32xf32>
    %cst_28 = arith.constant 1.000000e+00 : f32
    %119 = vector.broadcast %cst_28 : f32 to vector<2x32xf32>
    %120 = arith.addf %119, %118 : vector<2x32xf32>
    %121 = arith.divf %119, %120 : vector<2x32xf32>
    %122 = vector.extract_strided_slice %107 {offsets = [0, 32], sizes = [2, 32], strides = [1, 1]} : vector<2x128xf32> to vector<2x32xf32>
    %123 = arith.negf %122 : vector<2x32xf32>
    %124 = math.exp %123 : vector<2x32xf32>
    %cst_29 = arith.constant 1.000000e+00 : f32
    %125 = vector.broadcast %cst_29 : f32 to vector<2x32xf32>
    %126 = arith.addf %125, %124 : vector<2x32xf32>
    %127 = arith.divf %125, %126 : vector<2x32xf32>
    %128 = vector.extract_strided_slice %109 {offsets = [0, 32], sizes = [2, 32], strides = [1, 1]} : vector<2x128xf32> to vector<2x32xf32>
    %129 = arith.negf %128 : vector<2x32xf32>
    %130 = math.exp %129 : vector<2x32xf32>
    %cst_30 = arith.constant 1.000000e+00 : f32
    %131 = vector.broadcast %cst_30 : f32 to vector<2x32xf32>
    %132 = arith.addf %131, %130 : vector<2x32xf32>
    %133 = arith.divf %131, %132 : vector<2x32xf32>
    %134 = vector.extract_strided_slice %107 {offsets = [0, 64], sizes = [2, 32], strides = [1, 1]} : vector<2x128xf32> to vector<2x32xf32>
    %135 = math.tanh %134 : vector<2x32xf32>
    %136 = vector.extract_strided_slice %109 {offsets = [0, 64], sizes = [2, 32], strides = [1, 1]} : vector<2x128xf32> to vector<2x32xf32>
    %137 = math.tanh %136 : vector<2x32xf32>
    %138 = vector.extract_strided_slice %107 {offsets = [0, 96], sizes = [2, 32], strides = [1, 1]} : vector<2x128xf32> to vector<2x32xf32>
    %139 = arith.negf %138 : vector<2x32xf32>
    %140 = math.exp %139 : vector<2x32xf32>
    %cst_31 = arith.constant 1.000000e+00 : f32
    %141 = vector.broadcast %cst_31 : f32 to vector<2x32xf32>
    %142 = arith.addf %141, %140 : vector<2x32xf32>
    %143 = arith.divf %141, %142 : vector<2x32xf32>
    %144 = vector.extract_strided_slice %109 {offsets = [0, 96], sizes = [2, 32], strides = [1, 1]} : vector<2x128xf32> to vector<2x32xf32>
    %145 = arith.negf %144 : vector<2x32xf32>
    %146 = math.exp %145 : vector<2x32xf32>
    %cst_32 = arith.constant 1.000000e+00 : f32
    %147 = vector.broadcast %cst_32 : f32 to vector<2x32xf32>
    %148 = arith.addf %147, %146 : vector<2x32xf32>
    %149 = arith.divf %147, %148 : vector<2x32xf32>
    %150 = arith.mulf %127, %94 : vector<2x32xf32>
    %151 = arith.mulf %115, %135 : vector<2x32xf32>
    %152 = arith.addf %150, %151 : vector<2x32xf32>
    %153 = arith.mulf %133, %97 : vector<2x32xf32>
    %154 = arith.mulf %121, %137 : vector<2x32xf32>
    %155 = arith.addf %153, %154 : vector<2x32xf32>
    %156 = math.tanh %152 : vector<2x32xf32>
    %157 = arith.mulf %143, %156 : vector<2x32xf32>
    %158 = math.tanh %155 : vector<2x32xf32>
    %159 = arith.mulf %149, %158 : vector<2x32xf32>
    %c4 = arith.constant 4 : index
    %c0_33 = arith.constant 0 : index
    %160 = vector.load %arg8[%c4, %c0_33] : memref<16x64xf32, #tpu.memory_space<vmem>>, vector<2x32xf32>
    tpu.vector_store %arg8[%c4, %c0_33], %157 {strides = array<i32>} : memref<16x64xf32, #tpu.memory_space<vmem>>, vector<2x32xf32>,
    %c10 = arith.constant 10 : index
    %c32_34 = arith.constant 32 : index
    %161 = vector.load %arg8[%c10, %c32_34] : memref<16x64xf32, #tpu.memory_space<vmem>>, vector<2x32xf32>
    tpu.vector_store %arg8[%c10, %c32_34], %159 {strides = array<i32>} : memref<16x64xf32, #tpu.memory_space<vmem>>, vector<2x32xf32>,
    %162 = vector.extract_strided_slice %5 {offsets = [6, 0], sizes = [2, 128], strides = [1, 1]} : vector<16x256xf32> to vector<2x128xf32>
    %163 = vector.extract_strided_slice %5 {offsets = [8, 128], sizes = [2, 128], strides = [1, 1]} : vector<16x256xf32> to vector<2x128xf32>
    %cst_35 = arith.constant dense<0.000000e+00> : vector<2x128xf32>
    %164 = tpu.matmul %157, %6, %cst_35 {dimension_numbers = #tpu.dot_dimension_numbers<[1], [0], [0], [1], [0, 0, 1, 1], [], []>} : vector<2x32xf32>, vector<32x128xf32>, vector<2x128xf32> -> vector<2x128xf32>
    %165 = arith.addf %162, %164 : vector<2x128xf32>
    %cst_36 = arith.constant dense<0.000000e+00> : vector<2x128xf32>
    %166 = tpu.matmul %159, %7, %cst_36 {dimension_numbers = #tpu.dot_dimension_numbers<[1], [0], [0], [1], [0, 0, 1, 1], [], []>} : vector<2x32xf32>, vector<32x128xf32>, vector<2x128xf32> -> vector<2x128xf32>
    %167 = arith.addf %163, %166 : vector<2x128xf32>
    %168 = vector.extract_strided_slice %165 {offsets = [0, 0], sizes = [2, 32], strides = [1, 1]} : vector<2x128xf32> to vector<2x32xf32>
    %169 = arith.negf %168 : vector<2x32xf32>
    %170 = math.exp %169 : vector<2x32xf32>
    %cst_37 = arith.constant 1.000000e+00 : f32
    %171 = vector.broadcast %cst_37 : f32 to vector<2x32xf32>
    %172 = arith.addf %171, %170 : vector<2x32xf32>
    %173 = arith.divf %171, %172 : vector<2x32xf32>
    %174 = vector.extract_strided_slice %167 {offsets = [0, 0], sizes = [2, 32], strides = [1, 1]} : vector<2x128xf32> to vector<2x32xf32>
    %175 = arith.negf %174 : vector<2x32xf32>
    %176 = math.exp %175 : vector<2x32xf32>
    %cst_38 = arith.constant 1.000000e+00 : f32
    %177 = vector.broadcast %cst_38 : f32 to vector<2x32xf32>
    %178 = arith.addf %177, %176 : vector<2x32xf32>
    %179 = arith.divf %177, %178 : vector<2x32xf32>
    %180 = vector.extract_strided_slice %165 {offsets = [0, 32], sizes = [2, 32], strides = [1, 1]} : vector<2x128xf32> to vector<2x32xf32>
    %181 = arith.negf %180 : vector<2x32xf32>
    %182 = math.exp %181 : vector<2x32xf32>
    %cst_39 = arith.constant 1.000000e+00 : f32
    %183 = vector.broadcast %cst_39 : f32 to vector<2x32xf32>
    %184 = arith.addf %183, %182 : vector<2x32xf32>
    %185 = arith.divf %183, %184 : vector<2x32xf32>
    %186 = vector.extract_strided_slice %167 {offsets = [0, 32], sizes = [2, 32], strides = [1, 1]} : vector<2x128xf32> to vector<2x32xf32>
    %187 = arith.negf %186 : vector<2x32xf32>
    %188 = math.exp %187 : vector<2x32xf32>
    %cst_40 = arith.constant 1.000000e+00 : f32
    %189 = vector.broadcast %cst_40 : f32 to vector<2x32xf32>
    %190 = arith.addf %189, %188 : vector<2x32xf32>
    %191 = arith.divf %189, %190 : vector<2x32xf32>
    %192 = vector.extract_strided_slice %165 {offsets = [0, 64], sizes = [2, 32], strides = [1, 1]} : vector<2x128xf32> to vector<2x32xf32>
    %193 = math.tanh %192 : vector<2x32xf32>
    %194 = vector.extract_strided_slice %167 {offsets = [0, 64], sizes = [2, 32], strides = [1, 1]} : vector<2x128xf32> to vector<2x32xf32>
    %195 = math.tanh %194 : vector<2x32xf32>
    %196 = vector.extract_strided_slice %165 {offsets = [0, 96], sizes = [2, 32], strides = [1, 1]} : vector<2x128xf32> to vector<2x32xf32>
    %197 = arith.negf %196 : vector<2x32xf32>
    %198 = math.exp %197 : vector<2x32xf32>
    %cst_41 = arith.constant 1.000000e+00 : f32
    %199 = vector.broadcast %cst_41 : f32 to vector<2x32xf32>
    %200 = arith.addf %199, %198 : vector<2x32xf32>
    %201 = arith.divf %199, %200 : vector<2x32xf32>
    %202 = vector.extract_strided_slice %167 {offsets = [0, 96], sizes = [2, 32], strides = [1, 1]} : vector<2x128xf32> to vector<2x32xf32>
    %203 = arith.negf %202 : vector<2x32xf32>
    %204 = math.exp %203 : vector<2x32xf32>
    %cst_42 = arith.constant 1.000000e+00 : f32
    %205 = vector.broadcast %cst_42 : f32 to vector<2x32xf32>
    %206 = arith.addf %205, %204 : vector<2x32xf32>
    %207 = arith.divf %205, %206 : vector<2x32xf32>
    %208 = arith.mulf %185, %152 : vector<2x32xf32>
    %209 = arith.mulf %173, %193 : vector<2x32xf32>
    %210 = arith.addf %208, %209 : vector<2x32xf32>
    %211 = arith.mulf %191, %155 : vector<2x32xf32>
    %212 = arith.mulf %179, %195 : vector<2x32xf32>
    %213 = arith.addf %211, %212 : vector<2x32xf32>
    %214 = math.tanh %210 : vector<2x32xf32>
    %215 = arith.mulf %201, %214 : vector<2x32xf32>
    %216 = math.tanh %213 : vector<2x32xf32>
    %217 = arith.mulf %207, %216 : vector<2x32xf32>
    %c6 = arith.constant 6 : index
    %c0_43 = arith.constant 0 : index
    %218 = vector.load %arg8[%c6, %c0_43] : memref<16x64xf32, #tpu.memory_space<vmem>>, vector<2x32xf32>
    tpu.vector_store %arg8[%c6, %c0_43], %215 {strides = array<i32>} : memref<16x64xf32, #tpu.memory_space<vmem>>, vector<2x32xf32>,
    %c8 = arith.constant 8 : index
    %c32_44 = arith.constant 32 : index
    %219 = vector.load %arg8[%c8, %c32_44] : memref<16x64xf32, #tpu.memory_space<vmem>>, vector<2x32xf32>
    tpu.vector_store %arg8[%c8, %c32_44], %217 {strides = array<i32>} : memref<16x64xf32, #tpu.memory_space<vmem>>, vector<2x32xf32>,
    %220 = vector.extract_strided_slice %5 {offsets = [8, 0], sizes = [2, 128], strides = [1, 1]} : vector<16x256xf32> to vector<2x128xf32>
    %221 = vector.extract_strided_slice %5 {offsets = [6, 128], sizes = [2, 128], strides = [1, 1]} : vector<16x256xf32> to vector<2x128xf32>
    %cst_45 = arith.constant dense<0.000000e+00> : vector<2x128xf32>
    %222 = tpu.matmul %215, %6, %cst_45 {dimension_numbers = #tpu.dot_dimension_numbers<[1], [0], [0], [1], [0, 0, 1, 1], [], []>} : vector<2x32xf32>, vector<32x128xf32>, vector<2x128xf32> -> vector<2x128xf32>
    %223 = arith.addf %220, %222 : vector<2x128xf32>
    %cst_46 = arith.constant dense<0.000000e+00> : vector<2x128xf32>
    %224 = tpu.matmul %217, %7, %cst_46 {dimension_numbers = #tpu.dot_dimension_numbers<[1], [0], [0], [1], [0, 0, 1, 1], [], []>} : vector<2x32xf32>, vector<32x128xf32>, vector<2x128xf32> -> vector<2x128xf32>
    %225 = arith.addf %221, %224 : vector<2x128xf32>
    %226 = vector.extract_strided_slice %223 {offsets = [0, 0], sizes = [2, 32], strides = [1, 1]} : vector<2x128xf32> to vector<2x32xf32>
    %227 = arith.negf %226 : vector<2x32xf32>
    %228 = math.exp %227 : vector<2x32xf32>
    %cst_47 = arith.constant 1.000000e+00 : f32
    %229 = vector.broadcast %cst_47 : f32 to vector<2x32xf32>
    %230 = arith.addf %229, %228 : vector<2x32xf32>
    %231 = arith.divf %229, %230 : vector<2x32xf32>
    %232 = vector.extract_strided_slice %225 {offsets = [0, 0], sizes = [2, 32], strides = [1, 1]} : vector<2x128xf32> to vector<2x32xf32>
    %233 = arith.negf %232 : vector<2x32xf32>
    %234 = math.exp %233 : vector<2x32xf32>
    %cst_48 = arith.constant 1.000000e+00 : f32
    %235 = vector.broadcast %cst_48 : f32 to vector<2x32xf32>
    %236 = arith.addf %235, %234 : vector<2x32xf32>
    %237 = arith.divf %235, %236 : vector<2x32xf32>
    %238 = vector.extract_strided_slice %223 {offsets = [0, 32], sizes = [2, 32], strides = [1, 1]} : vector<2x128xf32> to vector<2x32xf32>
    %239 = arith.negf %238 : vector<2x32xf32>
    %240 = math.exp %239 : vector<2x32xf32>
    %cst_49 = arith.constant 1.000000e+00 : f32
    %241 = vector.broadcast %cst_49 : f32 to vector<2x32xf32>
    %242 = arith.addf %241, %240 : vector<2x32xf32>
    %243 = arith.divf %241, %242 : vector<2x32xf32>
    %244 = vector.extract_strided_slice %225 {offsets = [0, 32], sizes = [2, 32], strides = [1, 1]} : vector<2x128xf32> to vector<2x32xf32>
    %245 = arith.negf %244 : vector<2x32xf32>
    %246 = math.exp %245 : vector<2x32xf32>
    %cst_50 = arith.constant 1.000000e+00 : f32
    %247 = vector.broadcast %cst_50 : f32 to vector<2x32xf32>
    %248 = arith.addf %247, %246 : vector<2x32xf32>
    %249 = arith.divf %247, %248 : vector<2x32xf32>
    %250 = vector.extract_strided_slice %223 {offsets = [0, 64], sizes = [2, 32], strides = [1, 1]} : vector<2x128xf32> to vector<2x32xf32>
    %251 = math.tanh %250 : vector<2x32xf32>
    %252 = vector.extract_strided_slice %225 {offsets = [0, 64], sizes = [2, 32], strides = [1, 1]} : vector<2x128xf32> to vector<2x32xf32>
    %253 = math.tanh %252 : vector<2x32xf32>
    %254 = vector.extract_strided_slice %223 {offsets = [0, 96], sizes = [2, 32], strides = [1, 1]} : vector<2x128xf32> to vector<2x32xf32>
    %255 = arith.negf %254 : vector<2x32xf32>
    %256 = math.exp %255 : vector<2x32xf32>
    %cst_51 = arith.constant 1.000000e+00 : f32
    %257 = vector.broadcast %cst_51 : f32 to vector<2x32xf32>
    %258 = arith.addf %257, %256 : vector<2x32xf32>
    %259 = arith.divf %257, %258 : vector<2x32xf32>
    %260 = vector.extract_strided_slice %225 {offsets = [0, 96], sizes = [2, 32], strides = [1, 1]} : vector<2x128xf32> to vector<2x32xf32>
    %261 = arith.negf %260 : vector<2x32xf32>
    %262 = math.exp %261 : vector<2x32xf32>
    %cst_52 = arith.constant 1.000000e+00 : f32
    %263 = vector.broadcast %cst_52 : f32 to vector<2x32xf32>
    %264 = arith.addf %263, %262 : vector<2x32xf32>
    %265 = arith.divf %263, %264 : vector<2x32xf32>
    %266 = arith.mulf %243, %210 : vector<2x32xf32>
    %267 = arith.mulf %231, %251 : vector<2x32xf32>
    %268 = arith.addf %266, %267 : vector<2x32xf32>
    %269 = arith.mulf %249, %213 : vector<2x32xf32>
    %270 = arith.mulf %237, %253 : vector<2x32xf32>
    %271 = arith.addf %269, %270 : vector<2x32xf32>
    %272 = math.tanh %268 : vector<2x32xf32>
    %273 = arith.mulf %259, %272 : vector<2x32xf32>
    %274 = math.tanh %271 : vector<2x32xf32>
    %275 = arith.mulf %265, %274 : vector<2x32xf32>
    %c8_53 = arith.constant 8 : index
    %c0_54 = arith.constant 0 : index
    %276 = vector.load %arg8[%c8_53, %c0_54] : memref<16x64xf32, #tpu.memory_space<vmem>>, vector<2x32xf32>
    tpu.vector_store %arg8[%c8_53, %c0_54], %273 {strides = array<i32>} : memref<16x64xf32, #tpu.memory_space<vmem>>, vector<2x32xf32>,
    %c6_55 = arith.constant 6 : index
    %c32_56 = arith.constant 32 : index
    %277 = vector.load %arg8[%c6_55, %c32_56] : memref<16x64xf32, #tpu.memory_space<vmem>>, vector<2x32xf32>
    tpu.vector_store %arg8[%c6_55, %c32_56], %275 {strides = array<i32>} : memref<16x64xf32, #tpu.memory_space<vmem>>, vector<2x32xf32>,
    %278 = vector.extract_strided_slice %5 {offsets = [10, 0], sizes = [2, 128], strides = [1, 1]} : vector<16x256xf32> to vector<2x128xf32>
    %279 = vector.extract_strided_slice %5 {offsets = [4, 128], sizes = [2, 128], strides = [1, 1]} : vector<16x256xf32> to vector<2x128xf32>
    %cst_57 = arith.constant dense<0.000000e+00> : vector<2x128xf32>
    %280 = tpu.matmul %273, %6, %cst_57 {dimension_numbers = #tpu.dot_dimension_numbers<[1], [0], [0], [1], [0, 0, 1, 1], [], []>} : vector<2x32xf32>, vector<32x128xf32>, vector<2x128xf32> -> vector<2x128xf32>
    %281 = arith.addf %278, %280 : vector<2x128xf32>
    %cst_58 = arith.constant dense<0.000000e+00> : vector<2x128xf32>
    %282 = tpu.matmul %275, %7, %cst_58 {dimension_numbers = #tpu.dot_dimension_numbers<[1], [0], [0], [1], [0, 0, 1, 1], [], []>} : vector<2x32xf32>, vector<32x128xf32>, vector<2x128xf32> -> vector<2x128xf32>
    %283 = arith.addf %279, %282 : vector<2x128xf32>
    %284 = vector.extract_strided_slice %281 {offsets = [0, 0], sizes = [2, 32], strides = [1, 1]} : vector<2x128xf32> to vector<2x32xf32>
    %285 = arith.negf %284 : vector<2x32xf32>
    %286 = math.exp %285 : vector<2x32xf32>
    %cst_59 = arith.constant 1.000000e+00 : f32
    %287 = vector.broadcast %cst_59 : f32 to vector<2x32xf32>
    %288 = arith.addf %287, %286 : vector<2x32xf32>
    %289 = arith.divf %287, %288 : vector<2x32xf32>
    %290 = vector.extract_strided_slice %283 {offsets = [0, 0], sizes = [2, 32], strides = [1, 1]} : vector<2x128xf32> to vector<2x32xf32>
    %291 = arith.negf %290 : vector<2x32xf32>
    %292 = math.exp %291 : vector<2x32xf32>
    %cst_60 = arith.constant 1.000000e+00 : f32
    %293 = vector.broadcast %cst_60 : f32 to vector<2x32xf32>
    %294 = arith.addf %293, %292 : vector<2x32xf32>
    %295 = arith.divf %293, %294 : vector<2x32xf32>
    %296 = vector.extract_strided_slice %281 {offsets = [0, 32], sizes = [2, 32], strides = [1, 1]} : vector<2x128xf32> to vector<2x32xf32>
    %297 = arith.negf %296 : vector<2x32xf32>
    %298 = math.exp %297 : vector<2x32xf32>
    %cst_61 = arith.constant 1.000000e+00 : f32
    %299 = vector.broadcast %cst_61 : f32 to vector<2x32xf32>
    %300 = arith.addf %299, %298 : vector<2x32xf32>
    %301 = arith.divf %299, %300 : vector<2x32xf32>
    %302 = vector.extract_strided_slice %283 {offsets = [0, 32], sizes = [2, 32], strides = [1, 1]} : vector<2x128xf32> to vector<2x32xf32>
    %303 = arith.negf %302 : vector<2x32xf32>
    %304 = math.exp %303 : vector<2x32xf32>
    %cst_62 = arith.constant 1.000000e+00 : f32
    %305 = vector.broadcast %cst_62 : f32 to vector<2x32xf32>
    %306 = arith.addf %305, %304 : vector<2x32xf32>
    %307 = arith.divf %305, %306 : vector<2x32xf32>
    %308 = vector.extract_strided_slice %281 {offsets = [0, 64], sizes = [2, 32], strides = [1, 1]} : vector<2x128xf32> to vector<2x32xf32>
    %309 = math.tanh %308 : vector<2x32xf32>
    %310 = vector.extract_strided_slice %283 {offsets = [0, 64], sizes = [2, 32], strides = [1, 1]} : vector<2x128xf32> to vector<2x32xf32>
    %311 = math.tanh %310 : vector<2x32xf32>
    %312 = vector.extract_strided_slice %281 {offsets = [0, 96], sizes = [2, 32], strides = [1, 1]} : vector<2x128xf32> to vector<2x32xf32>
    %313 = arith.negf %312 : vector<2x32xf32>
    %314 = math.exp %313 : vector<2x32xf32>
    %cst_63 = arith.constant 1.000000e+00 : f32
    %315 = vector.broadcast %cst_63 : f32 to vector<2x32xf32>
    %316 = arith.addf %315, %314 : vector<2x32xf32>
    %317 = arith.divf %315, %316 : vector<2x32xf32>
    %318 = vector.extract_strided_slice %283 {offsets = [0, 96], sizes = [2, 32], strides = [1, 1]} : vector<2x128xf32> to vector<2x32xf32>
    %319 = arith.negf %318 : vector<2x32xf32>
    %320 = math.exp %319 : vector<2x32xf32>
    %cst_64 = arith.constant 1.000000e+00 : f32
    %321 = vector.broadcast %cst_64 : f32 to vector<2x32xf32>
    %322 = arith.addf %321, %320 : vector<2x32xf32>
    %323 = arith.divf %321, %322 : vector<2x32xf32>
    %324 = arith.mulf %301, %268 : vector<2x32xf32>
    %325 = arith.mulf %289, %309 : vector<2x32xf32>
    %326 = arith.addf %324, %325 : vector<2x32xf32>
    %327 = arith.mulf %307, %271 : vector<2x32xf32>
    %328 = arith.mulf %295, %311 : vector<2x32xf32>
    %329 = arith.addf %327, %328 : vector<2x32xf32>
    %330 = math.tanh %326 : vector<2x32xf32>
    %331 = arith.mulf %317, %330 : vector<2x32xf32>
    %332 = math.tanh %329 : vector<2x32xf32>
    %333 = arith.mulf %323, %332 : vector<2x32xf32>
    %c10_65 = arith.constant 10 : index
    %c0_66 = arith.constant 0 : index
    %334 = vector.load %arg8[%c10_65, %c0_66] : memref<16x64xf32, #tpu.memory_space<vmem>>, vector<2x32xf32>
    tpu.vector_store %arg8[%c10_65, %c0_66], %331 {strides = array<i32>} : memref<16x64xf32, #tpu.memory_space<vmem>>, vector<2x32xf32>,
    %c4_67 = arith.constant 4 : index
    %c32_68 = arith.constant 32 : index
    %335 = vector.load %arg8[%c4_67, %c32_68] : memref<16x64xf32, #tpu.memory_space<vmem>>, vector<2x32xf32>
    tpu.vector_store %arg8[%c4_67, %c32_68], %333 {strides = array<i32>} : memref<16x64xf32, #tpu.memory_space<vmem>>, vector<2x32xf32>,
    %336 = vector.extract_strided_slice %5 {offsets = [12, 0], sizes = [2, 128], strides = [1, 1]} : vector<16x256xf32> to vector<2x128xf32>
    %337 = vector.extract_strided_slice %5 {offsets = [2, 128], sizes = [2, 128], strides = [1, 1]} : vector<16x256xf32> to vector<2x128xf32>
    %cst_69 = arith.constant dense<0.000000e+00> : vector<2x128xf32>
    %338 = tpu.matmul %331, %6, %cst_69 {dimension_numbers = #tpu.dot_dimension_numbers<[1], [0], [0], [1], [0, 0, 1, 1], [], []>} : vector<2x32xf32>, vector<32x128xf32>, vector<2x128xf32> -> vector<2x128xf32>
    %339 = arith.addf %336, %338 : vector<2x128xf32>
    %cst_70 = arith.constant dense<0.000000e+00> : vector<2x128xf32>
    %340 = tpu.matmul %333, %7, %cst_70 {dimension_numbers = #tpu.dot_dimension_numbers<[1], [0], [0], [1], [0, 0, 1, 1], [], []>} : vector<2x32xf32>, vector<32x128xf32>, vector<2x128xf32> -> vector<2x128xf32>
    %341 = arith.addf %337, %340 : vector<2x128xf32>
    %342 = vector.extract_strided_slice %339 {offsets = [0, 0], sizes = [2, 32], strides = [1, 1]} : vector<2x128xf32> to vector<2x32xf32>
    %343 = arith.negf %342 : vector<2x32xf32>
    %344 = math.exp %343 : vector<2x32xf32>
    %cst_71 = arith.constant 1.000000e+00 : f32
    %345 = vector.broadcast %cst_71 : f32 to vector<2x32xf32>
    %346 = arith.addf %345, %344 : vector<2x32xf32>
    %347 = arith.divf %345, %346 : vector<2x32xf32>
    %348 = vector.extract_strided_slice %341 {offsets = [0, 0], sizes = [2, 32], strides = [1, 1]} : vector<2x128xf32> to vector<2x32xf32>
    %349 = arith.negf %348 : vector<2x32xf32>
    %350 = math.exp %349 : vector<2x32xf32>
    %cst_72 = arith.constant 1.000000e+00 : f32
    %351 = vector.broadcast %cst_72 : f32 to vector<2x32xf32>
    %352 = arith.addf %351, %350 : vector<2x32xf32>
    %353 = arith.divf %351, %352 : vector<2x32xf32>
    %354 = vector.extract_strided_slice %339 {offsets = [0, 32], sizes = [2, 32], strides = [1, 1]} : vector<2x128xf32> to vector<2x32xf32>
    %355 = arith.negf %354 : vector<2x32xf32>
    %356 = math.exp %355 : vector<2x32xf32>
    %cst_73 = arith.constant 1.000000e+00 : f32
    %357 = vector.broadcast %cst_73 : f32 to vector<2x32xf32>
    %358 = arith.addf %357, %356 : vector<2x32xf32>
    %359 = arith.divf %357, %358 : vector<2x32xf32>
    %360 = vector.extract_strided_slice %341 {offsets = [0, 32], sizes = [2, 32], strides = [1, 1]} : vector<2x128xf32> to vector<2x32xf32>
    %361 = arith.negf %360 : vector<2x32xf32>
    %362 = math.exp %361 : vector<2x32xf32>
    %cst_74 = arith.constant 1.000000e+00 : f32
    %363 = vector.broadcast %cst_74 : f32 to vector<2x32xf32>
    %364 = arith.addf %363, %362 : vector<2x32xf32>
    %365 = arith.divf %363, %364 : vector<2x32xf32>
    %366 = vector.extract_strided_slice %339 {offsets = [0, 64], sizes = [2, 32], strides = [1, 1]} : vector<2x128xf32> to vector<2x32xf32>
    %367 = math.tanh %366 : vector<2x32xf32>
    %368 = vector.extract_strided_slice %341 {offsets = [0, 64], sizes = [2, 32], strides = [1, 1]} : vector<2x128xf32> to vector<2x32xf32>
    %369 = math.tanh %368 : vector<2x32xf32>
    %370 = vector.extract_strided_slice %339 {offsets = [0, 96], sizes = [2, 32], strides = [1, 1]} : vector<2x128xf32> to vector<2x32xf32>
    %371 = arith.negf %370 : vector<2x32xf32>
    %372 = math.exp %371 : vector<2x32xf32>
    %cst_75 = arith.constant 1.000000e+00 : f32
    %373 = vector.broadcast %cst_75 : f32 to vector<2x32xf32>
    %374 = arith.addf %373, %372 : vector<2x32xf32>
    %375 = arith.divf %373, %374 : vector<2x32xf32>
    %376 = vector.extract_strided_slice %341 {offsets = [0, 96], sizes = [2, 32], strides = [1, 1]} : vector<2x128xf32> to vector<2x32xf32>
    %377 = arith.negf %376 : vector<2x32xf32>
    %378 = math.exp %377 : vector<2x32xf32>
    %cst_76 = arith.constant 1.000000e+00 : f32
    %379 = vector.broadcast %cst_76 : f32 to vector<2x32xf32>
    %380 = arith.addf %379, %378 : vector<2x32xf32>
    %381 = arith.divf %379, %380 : vector<2x32xf32>
    %382 = arith.mulf %359, %326 : vector<2x32xf32>
    %383 = arith.mulf %347, %367 : vector<2x32xf32>
    %384 = arith.addf %382, %383 : vector<2x32xf32>
    %385 = arith.mulf %365, %329 : vector<2x32xf32>
    %386 = arith.mulf %353, %369 : vector<2x32xf32>
    %387 = arith.addf %385, %386 : vector<2x32xf32>
    %388 = math.tanh %384 : vector<2x32xf32>
    %389 = arith.mulf %375, %388 : vector<2x32xf32>
    %390 = math.tanh %387 : vector<2x32xf32>
    %391 = arith.mulf %381, %390 : vector<2x32xf32>
    %c12_77 = arith.constant 12 : index
    %c0_78 = arith.constant 0 : index
    %392 = vector.load %arg8[%c12_77, %c0_78] : memref<16x64xf32, #tpu.memory_space<vmem>>, vector<2x32xf32>
    tpu.vector_store %arg8[%c12_77, %c0_78], %389 {strides = array<i32>} : memref<16x64xf32, #tpu.memory_space<vmem>>, vector<2x32xf32>,
    %c2_79 = arith.constant 2 : index
    %c32_80 = arith.constant 32 : index
    %393 = vector.load %arg8[%c2_79, %c32_80] : memref<16x64xf32, #tpu.memory_space<vmem>>, vector<2x32xf32>
    tpu.vector_store %arg8[%c2_79, %c32_80], %391 {strides = array<i32>} : memref<16x64xf32, #tpu.memory_space<vmem>>, vector<2x32xf32>,
    %394 = vector.extract_strided_slice %5 {offsets = [14, 0], sizes = [2, 128], strides = [1, 1]} : vector<16x256xf32> to vector<2x128xf32>
    %395 = vector.extract_strided_slice %5 {offsets = [0, 128], sizes = [2, 128], strides = [1, 1]} : vector<16x256xf32> to vector<2x128xf32>
    %cst_81 = arith.constant dense<0.000000e+00> : vector<2x128xf32>
    %396 = tpu.matmul %389, %6, %cst_81 {dimension_numbers = #tpu.dot_dimension_numbers<[1], [0], [0], [1], [0, 0, 1, 1], [], []>} : vector<2x32xf32>, vector<32x128xf32>, vector<2x128xf32> -> vector<2x128xf32>
    %397 = arith.addf %394, %396 : vector<2x128xf32>
    %cst_82 = arith.constant dense<0.000000e+00> : vector<2x128xf32>
    %398 = tpu.matmul %391, %7, %cst_82 {dimension_numbers = #tpu.dot_dimension_numbers<[1], [0], [0], [1], [0, 0, 1, 1], [], []>} : vector<2x32xf32>, vector<32x128xf32>, vector<2x128xf32> -> vector<2x128xf32>
    %399 = arith.addf %395, %398 : vector<2x128xf32>
    %400 = vector.extract_strided_slice %397 {offsets = [0, 0], sizes = [2, 32], strides = [1, 1]} : vector<2x128xf32> to vector<2x32xf32>
    %401 = arith.negf %400 : vector<2x32xf32>
    %402 = math.exp %401 : vector<2x32xf32>
    %cst_83 = arith.constant 1.000000e+00 : f32
    %403 = vector.broadcast %cst_83 : f32 to vector<2x32xf32>
    %404 = arith.addf %403, %402 : vector<2x32xf32>
    %405 = arith.divf %403, %404 : vector<2x32xf32>
    %406 = vector.extract_strided_slice %399 {offsets = [0, 0], sizes = [2, 32], strides = [1, 1]} : vector<2x128xf32> to vector<2x32xf32>
    %407 = arith.negf %406 : vector<2x32xf32>
    %408 = math.exp %407 : vector<2x32xf32>
    %cst_84 = arith.constant 1.000000e+00 : f32
    %409 = vector.broadcast %cst_84 : f32 to vector<2x32xf32>
    %410 = arith.addf %409, %408 : vector<2x32xf32>
    %411 = arith.divf %409, %410 : vector<2x32xf32>
    %412 = vector.extract_strided_slice %397 {offsets = [0, 32], sizes = [2, 32], strides = [1, 1]} : vector<2x128xf32> to vector<2x32xf32>
    %413 = arith.negf %412 : vector<2x32xf32>
    %414 = math.exp %413 : vector<2x32xf32>
    %cst_85 = arith.constant 1.000000e+00 : f32
    %415 = vector.broadcast %cst_85 : f32 to vector<2x32xf32>
    %416 = arith.addf %415, %414 : vector<2x32xf32>
    %417 = arith.divf %415, %416 : vector<2x32xf32>
    %418 = vector.extract_strided_slice %399 {offsets = [0, 32], sizes = [2, 32], strides = [1, 1]} : vector<2x128xf32> to vector<2x32xf32>
    %419 = arith.negf %418 : vector<2x32xf32>
    %420 = math.exp %419 : vector<2x32xf32>
    %cst_86 = arith.constant 1.000000e+00 : f32
    %421 = vector.broadcast %cst_86 : f32 to vector<2x32xf32>
    %422 = arith.addf %421, %420 : vector<2x32xf32>
    %423 = arith.divf %421, %422 : vector<2x32xf32>
    %424 = vector.extract_strided_slice %397 {offsets = [0, 64], sizes = [2, 32], strides = [1, 1]} : vector<2x128xf32> to vector<2x32xf32>
    %425 = math.tanh %424 : vector<2x32xf32>
    %426 = vector.extract_strided_slice %399 {offsets = [0, 64], sizes = [2, 32], strides = [1, 1]} : vector<2x128xf32> to vector<2x32xf32>
    %427 = math.tanh %426 : vector<2x32xf32>
    %428 = vector.extract_strided_slice %397 {offsets = [0, 96], sizes = [2, 32], strides = [1, 1]} : vector<2x128xf32> to vector<2x32xf32>
    %429 = arith.negf %428 : vector<2x32xf32>
    %430 = math.exp %429 : vector<2x32xf32>
    %cst_87 = arith.constant 1.000000e+00 : f32
    %431 = vector.broadcast %cst_87 : f32 to vector<2x32xf32>
    %432 = arith.addf %431, %430 : vector<2x32xf32>
    %433 = arith.divf %431, %432 : vector<2x32xf32>
    %434 = vector.extract_strided_slice %399 {offsets = [0, 96], sizes = [2, 32], strides = [1, 1]} : vector<2x128xf32> to vector<2x32xf32>
    %435 = arith.negf %434 : vector<2x32xf32>
    %436 = math.exp %435 : vector<2x32xf32>
    %cst_88 = arith.constant 1.000000e+00 : f32
    %437 = vector.broadcast %cst_88 : f32 to vector<2x32xf32>
    %438 = arith.addf %437, %436 : vector<2x32xf32>
    %439 = arith.divf %437, %438 : vector<2x32xf32>
    %440 = arith.mulf %417, %384 : vector<2x32xf32>
    %441 = arith.mulf %405, %425 : vector<2x32xf32>
    %442 = arith.addf %440, %441 : vector<2x32xf32>
    %443 = arith.mulf %423, %387 : vector<2x32xf32>
    %444 = arith.mulf %411, %427 : vector<2x32xf32>
    %445 = arith.addf %443, %444 : vector<2x32xf32>
    %446 = math.tanh %442 : vector<2x32xf32>
    %447 = arith.mulf %433, %446 : vector<2x32xf32>
    %448 = math.tanh %445 : vector<2x32xf32>
    %449 = arith.mulf %439, %448 : vector<2x32xf32>
    %c14_89 = arith.constant 14 : index
    %c0_90 = arith.constant 0 : index
    %450 = vector.load %arg8[%c14_89, %c0_90] : memref<16x64xf32, #tpu.memory_space<vmem>>, vector<2x32xf32>
    tpu.vector_store %arg8[%c14_89, %c0_90], %447 {strides = array<i32>} : memref<16x64xf32, #tpu.memory_space<vmem>>, vector<2x32xf32>,
    %c0_91 = arith.constant 0 : index
    %c32_92 = arith.constant 32 : index
    %451 = vector.load %arg8[%c0_91, %c32_92] : memref<16x64xf32, #tpu.memory_space<vmem>>, vector<2x32xf32>
    tpu.vector_store %arg8[%c0_91, %c32_92], %449 {strides = array<i32>} : memref<16x64xf32, #tpu.memory_space<vmem>>, vector<2x32xf32>,
    %c0_93 = arith.constant 0 : index
    %c0_94 = arith.constant 0 : index
    %452 = vector.load %arg8[%c0_93, %c0_94] : memref<16x64xf32, #tpu.memory_space<vmem>>, vector<16x64xf32>
    %c0_95 = arith.constant 0 : index
    %c0_96 = arith.constant 0 : index
    %453 = vector.load %arg5[%c0_95, %c0_96] : memref<64x16xf32, #tpu.memory_space<vmem>>, vector<64x16xf32>
    %cst_97 = arith.constant dense<0.000000e+00> : vector<16x16xf32>
    %454 = tpu.matmul %452, %453, %cst_97 {dimension_numbers = #tpu.dot_dimension_numbers<[1], [0], [0], [1], [0, 0, 1, 1], [], []>} : vector<16x64xf32>, vector<64x16xf32>, vector<16x16xf32> -> vector<16x16xf32>
    %c0_98 = arith.constant 0 : index
    %c0_99 = arith.constant 0 : index
    %455 = vector.load %arg6[%c0_98, %c0_99] : memref<1x16xf32, #tpu.memory_space<vmem>>, vector<1x16xf32>
    %456 = vector.broadcast %455 : vector<1x16xf32> to vector<16x16xf32>
    %457 = arith.addf %454, %456 : vector<16x16xf32>
    %c0_100 = arith.constant 0 : index
    %c0_101 = arith.constant 0 : index
    %458 = vector.load %arg7[%c0_100, %c0_101] : memref<16x16xf32, #tpu.memory_space<vmem>>, vector<16x16xf32>
    tpu.vector_store %arg7[%c0_100, %c0_101], %457 {strides = array<i32>} : memref<16x16xf32, #tpu.memory_space<vmem>>, vector<16x16xf32>,
    return
  }
}

</mosaic_0001>

<llo_original>
// kernel: _lambda_.1
$region0: #{_lambda_.1}
  #allocation0 [shape = 'u32[]', space=smem, size = 0x4, offset = 0x4, fixed_abs, tag = 'smem constant byte address 0x4 - core index']
  #allocation1 [shape = 'u32[144,128]{1,0:T(1,128)}', space=vmem, size = 0x12000, scoped, tag = 'internal scratch']
  #allocation2 [shape = 'f32[16,64]{1,0:T(8,128)}', space=vmem, size = 0x2000, scoped, tag = 'scratch operand']
  %s0 = inlined_call_operand.vmem [shape: f32[16,16], index: 0, kind: input, shape index: {}]
  %s1 = inlined_call_operand.hbm [shape: f32[16,256], index: 1, kind: input, shape index: {}]
  %s2 = inlined_call_operand.vmem [shape: f32[32,128], index: 2, kind: input, shape index: {}]
  %s3 = inlined_call_operand.vmem [shape: f32[32,128], index: 3, kind: input, shape index: {}]
  %s4 = inlined_call_operand.vmem [shape: f32[1,256], index: 4, kind: input, shape index: {}]
  %s5 = inlined_call_operand.vmem [shape: f32[64,16], index: 5, kind: input, shape index: {}]
  %s6 = inlined_call_operand.vmem [shape: f32[1,16], index: 6, kind: input, shape index: {}]
  %s7 = inlined_call_operand.vmem [shape: f32[16,16], index: 7, kind: output, shape index: {}]
  %s8 = sld [smem:[#allocation0]]
  $region42: #{_lambda_.1} parent=0
    _
  %s10 = ssub.s32 1, %s8
  %s11 = scalar_select 0, %s10, %s8
  $region1: #{_lambda_.1} parent=0
    #allocation3 [shape = 'u8[16384]{0}', space=vmem, size = 0x4000, scoped, tag = 'input window, operand 1, single buffered']
    #allocation4 [shape = 's32[1]{0}', space=sflag, size = 0x4, scoped, tag = 'scoped memory for _lambda_.1']
    %12 = vsyncpa [#allocation4], 0
    // Predicated region
    $region2: #{_lambda_.1} parent=1 // pred_check
      _
    $region3: #{_lambda_.1} parent=1 // pred_check_branch
      %14 = sbr.rel (0) target = $region5
    $region4: #{_lambda_.1} parent=1 // pred_region
      _
    $region5: #{_lambda_.1} parent=1 // pred_fallthru
      _
    // Predicated region
    $region6: #{_lambda_.1} parent=1 // pred_check
      _
    $region7: #{_lambda_.1} parent=1 // pred_check_branch
      %16 = sbr.rel (0) target = $region9
    $region8: #{_lambda_.1} parent=1 // pred_region
      %s18 = ssub.s32 512, 512
      %19 = vsyncadd [#allocation4], %s18
      %s20 = sshll.u32 [#allocation3], 4
      %s21 = int_to_ptr.vmem [resolvable:$true] %s20
      %26 = dma.hbm_to_vmem [thread:$0]  %s1, 512, %s21, [#allocation4], 256, 256, 16
    $region9: #{_lambda_.1} parent=1 // pred_fallthru
      _
    // Predicated region
    $region10: #{_lambda_.1} parent=1 // pred_check
      _
    $region11: #{_lambda_.1} parent=1 // pred_check_branch
      %28 = sbr.rel (0) target = $region13
    $region12: #{_lambda_.1} parent=1 // pred_region
      _
    $region13: #{_lambda_.1} parent=1 // pred_fallthru
      _
    // Predicated region
    $region14: #{_lambda_.1} parent=1 // pred_check
      _
    $region15: #{_lambda_.1} parent=1 // pred_check_branch
      %30 = sbr.rel (0) target = $region17
    $region16: #{_lambda_.1} parent=1 // pred_region
      _
    $region17: #{_lambda_.1} parent=1 // pred_fallthru
      _
    // Predicated region
    $region18: #{_lambda_.1} parent=1 // pred_check
      _
    $region19: #{_lambda_.1} parent=1 // pred_check_branch
      %32 = sbr.rel (0) target = $region21
    $region20: #{_lambda_.1} parent=1 // pred_region
      _
    $region21: #{_lambda_.1} parent=1 // pred_fallthru
      _
    // Predicated region
    $region22: #{_lambda_.1} parent=1 // pred_check
      _
    $region23: #{_lambda_.1} parent=1 // pred_check_branch
      %34 = sbr.rel (0) target = $region25
    $region24: #{_lambda_.1} parent=1 // pred_region
      _
    $region25: #{_lambda_.1} parent=1 // pred_fallthru
      _
    // Predicated region
    $region26: #{_lambda_.1} parent=1 // pred_check
      _
    $region27: #{_lambda_.1} parent=1 // pred_check_branch
      %36 = sbr.rel (0) target = $region29
    $region28: #{_lambda_.1} parent=1 // pred_region
      _
    $region29: #{_lambda_.1} parent=1 // pred_fallthru
      _
    // Predicated region
    $region30: #{_lambda_.1} parent=1 // pred_check
      _
    $region31: #{_lambda_.1} parent=1 // pred_check_branch
      %38 = sbr.rel (0) target = $region33
    $region32: #{_lambda_.1} parent=1 // pred_region
      %39 = dma.done [#allocation4], 512
    $region33: #{_lambda_.1} parent=1 // pred_fallthru
      _
    %v40 = vld [vmem:[%s0] sm:$0xff]
    %v41 = vld [vmem:[%s0 + $0x8] sm:$0xff]
    %v42 = vld [vmem:[#allocation3] sm:$0xff]
    %v43 = vld [vmem:[#allocation3 + $0x8] sm:$0xff]
    %v44 = vld [vmem:[#allocation3 + $0x10] sm:$0xff]
    %v45 = vld [vmem:[#allocation3 + $0x18] sm:$0xff]
    %v46 = vld [vmem:[%s4] sm:$0x3]
    %v48 = vlaneseq
    %v49 = vshrl.u32 %v48, 7
    %v50 = vsub.s32 0, %v49
    %v51 = vrot.slane %v46, %v50
    %v52 = vlaneseq
    %v53 = vshrl.u32 %v52, 7
    %v54 = vsub.s32 1, %v53
    %v55 = vrot.slane %v46, %v54
    %vm58 = vcmask 130048
    %v60 = vsel %vm58, %v40, 0
    %v63 = vsel %vm58, %v41, 0
    %65 = vmatprep.subr.mxu0 %v43
    %66 = vmatpush1.msra.mxu0 %v42
    %67 = vmatprep.subr.mxu0 %v45
    %68 = vmatpush1.msra.mxu0 %v44
    %69 = vmatprep.subr.mxu0 0.0
    %70 = vmatpush1.msra.mxu0 0.0
    %71 = vmatprep.subr.mxu0 0.0
    %72 = vmatpush1.msra.mxu0 0.0
    %73 = vmatprep.subr.mxu0 0.0
    %74 = vmatpush1.msra.mxu0 0.0
    %75 = vmatprep.subr.mxu0 0.0
    %76 = vmatpush1.msra.mxu0 0.0
    %77 = vmatprep.subr.mxu0 0.0
    %78 = vmatpush1.msra.mxu0 0.0
    %79 = vmatprep.subr.mxu0 0.0
    %80 = vmatpush1.msra.mxu0 0.0
    %81 = vmatprep.subr.mxu0 0.0
    %82 = vmatpush1.msra.mxu0 0.0
    %83 = vmatprep.subr.mxu0 0.0
    %84 = vmatpush1.msra.mxu0 0.0
    %85 = vmatprep.subr.mxu0 0.0
    %86 = vmatpush1.msra.mxu0 0.0
    %87 = vmatprep.subr.mxu0 0.0
    %88 = vmatpush1.msra.mxu0 0.0
    %89 = vmatprep.subr.mxu0 0.0
    %90 = vmatpush1.msra.mxu0 0.0
    %91 = vmatprep.subr.mxu0 0.0
    %92 = vmatpush1.msra.mxu0 0.0
    %93 = vmatprep.subr.mxu0 0.0
    %94 = vmatpush1.msra.mxu0 0.0
    %95 = vmatprep.subr.mxu0 0.0
    %96 = vmatpush1.msra.mxu0 0.0
    %97 = vmatprep.subr.mxu0 0.0
    %98 = vmatpush1.msra.mxu0 0.0
    %99 = vmatprep.subr.mxu0 0.0
    %100 = vmatpush1.msra.mxu0 0.0
    %101 = vmatprep.subr.mxu0 0.0
    %102 = vmatpush1.msra.mxu0 0.0
    %103 = vmatprep.subr.mxu0 0.0
    %104 = vmatpush1.msra.mxu0 0.0
    %105 = vmatprep.subr.mxu0 0.0
    %106 = vmatpush1.msra.mxu0 0.0
    %107 = vmatprep.subr.mxu0 0.0
    %108 = vmatpush1.msra.mxu0 0.0
    %109 = vmatprep.subr.mxu0 0.0
    %110 = vmatpush1.msra.mxu0 0.0
    %111 = vmatprep.subr.mxu0 0.0
    %112 = vmatpush1.msra.mxu0 0.0
    %113 = vmatprep.subr.mxu0 0.0
    %114 = vmatpush1.msra.mxu0 0.0
    %115 = vmatprep.subr.mxu0 0.0
    %116 = vmatpush1.msra.mxu0 0.0
    %117 = vmatprep.subr.mxu0 0.0
    %118 = vmatpush1.msra.mxu0 0.0
    %119 = vmatprep.subr.mxu0 0.0
    %120 = vmatpush1.msra.mxu0 0.0
    %121 = vmatprep.subr.mxu0 0.0
    %122 = vmatpush1.msra.mxu0 0.0
    %123 = vmatprep.subr.mxu0 0.0
    %124 = vmatpush1.msra.mxu0 0.0
    %125 = vmatprep.subr.mxu0 0.0
    %126 = vmatpush1.msra.mxu0 0.0
    %127 = vmatprep.subr.mxu0 0.0
    %128 = vmatpush1.msra.mxu0 0.0
    %129 = vmatprep.mubr.f32.mxu0 0.0
    %130 = vmatmul.mubr.f32.gmra.mrb[0].mxu0 %v60
    %v131 = vpop.f32.mrb[0].mxu0
    %v132 = vadd.f32 %v51, %v131
    %v133 = vpop.f32.mrb[0].mxu0
    %v134 = vadd.f32 %v55, %v133
    %135 = vmatprep.mubr.f32.mxu0 0.0
    %136 = vmatmul.mubr.f32.gmra.mrb[0].mxu0 %v63
    %v137 = vpop.f32.mrb[0].mxu0
    %v138 = vadd.f32 %v51, %v137
    %v139 = vpop.f32.mrb[0].mxu0
    %v140 = vadd.f32 %v55, %v139
    %141 = vdwg.mxu0
    %v142 = vld [vmem:[%s2] sm:$0xff]
    %v143 = vld [vmem:[%s2 + $0x8] sm:$0xff]
    %v144 = vld [vmem:[%s2 + $0x10] sm:$0xff]
    %v145 = vld [vmem:[%s2 + $0x18] sm:$0xff]
    %v146 = vld [vmem:[%s3] sm:$0xff]
    %v147 = vld [vmem:[%s3 + $0x8] sm:$0xff]
    %v148 = vld [vmem:[%s3 + $0x10] sm:$0xff]
    %v149 = vld [vmem:[%s3 + $0x18] sm:$0xff]
    %v150 = vxor.u32 %v132, 2147483648
    %v151 = vmul.f32 %v150, 1.442695
    %v152 = vpow.pop %v151
    %v153 = vadd.f32 %v152, 1.0
    %v154 = vrcp.pop %v153
    %v155 = vmul.f32 1.0, %v154
    %v156 = vxor.u32 %v140, 2147483648
    %v157 = vmul.f32 %v156, 1.442695
    %v158 = vpow.pop %v157
    %v159 = vadd.f32 %v158, 1.0
    %v160 = vrcp.pop %v159
    %v161 = vmul.f32 1.0, %v160
    %v162 = vtanh.pop %v132
    %v163 = vtanh.pop %v140
    %165 = vrot.lane.b32.xlu0 %v162, 64
    %v166 = vpop.permute.xlu0 %165
    %v168 = vmul.f32 %v155, %v166
    %170 = vrot.lane.b32.xlu0 %v163, 64
    %v171 = vpop.permute.xlu0 %170
    %v173 = vmul.f32 %v161, %v171
    %v174 = vtanh.pop %v168
    %176 = vrot.lane.b32.xlu0 %v174, 96
    %v177 = vpop.permute.xlu0 %176
    %v179 = vmul.f32 %v155, %v177
    %v180 = vtanh.pop %v173
    %182 = vrot.lane.b32.xlu0 %v180, 96
    %v183 = vpop.permute.xlu0 %182
    %v185 = vmul.f32 %v161, %v183
    %187 = vrot.lane.b32.xlu0 %v179, 32
    %v188 = vpop.permute.xlu0 %187
    %vm190 = vcmask 254976
    %191 = vst.msk [vmem:[#allocation2] sm:$0x3] %vm190, %v188
    %193 = vrot.lane.b32.xlu0 %v185, 64
    %v194 = vpop.permute.xlu0 %193
    %vm196 = vcmask 523526
    %197 = vst.msk [vmem:[#allocation2 + $0x8] sm:$0xc0] %vm196, %v194
    %vm198 = vcmask 261120
    %v199 = vsel %vm198, %v188, 0
    %201 = vmatprep.subr.mxu0 0.0
    %202 = vmatpush1.msra.mxu0 %v142
    %203 = vmatprep.subr.mxu0 0.0
    %204 = vmatpush1.msra.mxu0 %v143
    %205 = vmatprep.subr.mxu0 0.0
    %206 = vmatpush1.msra.mxu0 %v144
    %207 = vmatprep.subr.mxu0 0.0
    %208 = vmatpush1.msra.mxu0 %v145
    %209 = vmatprep.subr.mxu0 0.0
    %210 = vmatpush1.msra.mxu0 0.0
    %211 = vmatprep.subr.mxu0 0.0
    %212 = vmatpush1.msra.mxu0 0.0
    %213 = vmatprep.subr.mxu0 0.0
    %214 = vmatpush1.msra.mxu0 0.0
    %215 = vmatprep.subr.mxu0 0.0
    %216 = vmatpush1.msra.mxu0 0.0
    %217 = vmatprep.subr.mxu0 0.0
    %218 = vmatpush1.msra.mxu0 0.0
    %219 = vmatprep.subr.mxu0 0.0
    %220 = vmatpush1.msra.mxu0 0.0
    %221 = vmatprep.subr.mxu0 0.0
    %222 = vmatpush1.msra.mxu0 0.0
    %223 = vmatprep.subr.mxu0 0.0
    %224 = vmatpush1.msra.mxu0 0.0
    %225 = vmatprep.subr.mxu0 0.0
    %226 = vmatpush1.msra.mxu0 0.0
    %227 = vmatprep.subr.mxu0 0.0
    %228 = vmatpush1.msra.mxu0 0.0
    %229 = vmatprep.subr.mxu0 0.0
    %230 = vmatpush1.msra.mxu0 0.0
    %231 = vmatprep.subr.mxu0 0.0
    %232 = vmatpush1.msra.mxu0 0.0
    %233 = vmatprep.subr.mxu0 0.0
    %234 = vmatpush1.msra.mxu0 0.0
    %235 = vmatprep.subr.mxu0 0.0
    %236 = vmatpush1.msra.mxu0 0.0
    %237 = vmatprep.subr.mxu0 0.0
    %238 = vmatpush1.msra.mxu0 0.0
    %239 = vmatprep.subr.mxu0 0.0
    %240 = vmatpush1.msra.mxu0 0.0
    %241 = vmatprep.subr.mxu0 0.0
    %242 = vmatpush1.msra.mxu0 0.0
    %243 = vmatprep.subr.mxu0 0.0
    %244 = vmatpush1.msra.mxu0 0.0
    %245 = vmatprep.subr.mxu0 0.0
    %246 = vmatpush1.msra.mxu0 0.0
    %247 = vmatprep.subr.mxu0 0.0
    %248 = vmatpush1.msra.mxu0 0.0
    %249 = vmatprep.subr.mxu0 0.0
    %250 = vmatpush1.msra.mxu0 0.0
    %251 = vmatprep.subr.mxu0 0.0
    %252 = vmatpush1.msra.mxu0 0.0
    %253 = vmatprep.subr.mxu0 0.0
    %254 = vmatpush1.msra.mxu0 0.0
    %255 = vmatprep.subr.mxu0 0.0
    %256 = vmatpush1.msra.mxu0 0.0
    %257 = vmatprep.subr.mxu0 0.0
    %258 = vmatpush1.msra.mxu0 0.0
    %259 = vmatprep.subr.mxu0 0.0
    %260 = vmatpush1.msra.mxu0 0.0
    %261 = vmatprep.subr.mxu0 0.0
    %262 = vmatpush1.msra.mxu0 0.0
    %263 = vmatprep.subr.mxu0 0.0
    %264 = vmatpush1.msra.mxu0 0.0
    %265 = vmatprep.mubr.f32.mxu0 0.0
    %266 = vmatmul.mubr.f32.gmra.mrb[0].mxu0 %v199
    %v267 = vpop.f32.mrb[0].mxu0
    %v268 = vadd.f32 0.0, %v267
    %v269 = vpop.f32.mrb[0].mxu0
    %270 = vdwg.mxu0
    %v272 = vrot.slane %v268, 6
    %v274 = vadd.f32 %v132, %v272
    %v275 = vrot.slane %v185, 6
    %276 = vrot.lane.b32.xlu0 %v275, 32
    %v277 = vpop.permute.xlu0 %276
    %v278 = vsel %vm198, %v277, 0
    %280 = vmatprep.subr.mxu0 0.0
    %281 = vmatpush1.msra.mxu0 %v146
    %282 = vmatprep.subr.mxu0 0.0
    %283 = vmatpush1.msra.mxu0 %v147
    %284 = vmatprep.subr.mxu0 0.0
    %285 = vmatpush1.msra.mxu0 %v148
    %286 = vmatprep.subr.mxu0 0.0
    %287 = vmatpush1.msra.mxu0 %v149
    %288 = vmatprep.subr.mxu0 0.0
    %289 = vmatpush1.msra.mxu0 0.0
    %290 = vmatprep.subr.mxu0 0.0
    %291 = vmatpush1.msra.mxu0 0.0
    %292 = vmatprep.subr.mxu0 0.0
    %293 = vmatpush1.msra.mxu0 0.0
    %294 = vmatprep.subr.mxu0 0.0
    %295 = vmatpush1.msra.mxu0 0.0
    %296 = vmatprep.subr.mxu0 0.0
    %297 = vmatpush1.msra.mxu0 0.0
    %298 = vmatprep.subr.mxu0 0.0
    %299 = vmatpush1.msra.mxu0 0.0
    %300 = vmatprep.subr.mxu0 0.0
    %301 = vmatpush1.msra.mxu0 0.0
    %302 = vmatprep.subr.mxu0 0.0
    %303 = vmatpush1.msra.mxu0 0.0
    %304 = vmatprep.subr.mxu0 0.0
    %305 = vmatpush1.msra.mxu0 0.0
    %306 = vmatprep.subr.mxu0 0.0
    %307 = vmatpush1.msra.mxu0 0.0
    %308 = vmatprep.subr.mxu0 0.0
    %309 = vmatpush1.msra.mxu0 0.0
    %310 = vmatprep.subr.mxu0 0.0
    %311 = vmatpush1.msra.mxu0 0.0
    %312 = vmatprep.subr.mxu0 0.0
    %313 = vmatpush1.msra.mxu0 0.0
    %314 = vmatprep.subr.mxu0 0.0
    %315 = vmatpush1.msra.mxu0 0.0
    %316 = vmatprep.subr.mxu0 0.0
    %317 = vmatpush1.msra.mxu0 0.0
    %318 = vmatprep.subr.mxu0 0.0
    %319 = vmatpush1.msra.mxu0 0.0
    %320 = vmatprep.subr.mxu0 0.0
    %321 = vmatpush1.msra.mxu0 0.0
    %322 = vmatprep.subr.mxu0 0.0
    %323 = vmatpush1.msra.mxu0 0.0
    %324 = vmatprep.subr.mxu0 0.0
    %325 = vmatpush1.msra.mxu0 0.0
    %326 = vmatprep.subr.mxu0 0.0
    %327 = vmatpush1.msra.mxu0 0.0
    %328 = vmatprep.subr.mxu0 0.0
    %329 = vmatpush1.msra.mxu0 0.0
    %330 = vmatprep.subr.mxu0 0.0
    %331 = vmatpush1.msra.mxu0 0.0
    %332 = vmatprep.subr.mxu0 0.0
    %333 = vmatpush1.msra.mxu0 0.0
    %334 = vmatprep.subr.mxu0 0.0
    %335 = vmatpush1.msra.mxu0 0.0
    %336 = vmatprep.subr.mxu0 0.0
    %337 = vmatpush1.msra.mxu0 0.0
    %338 = vmatprep.subr.mxu0 0.0
    %339 = vmatpush1.msra.mxu0 0.0
    %340 = vmatprep.subr.mxu0 0.0
    %341 = vmatpush1.msra.mxu0 0.0
    %342 = vmatprep.subr.mxu0 0.0
    %343 = vmatpush1.msra.mxu0 0.0
    %344 = vmatprep.mubr.f32.mxu0 0.0
    %345 = vmatmul.mubr.f32.gmra.mrb[0].mxu0 %v278
    %v346 = vpop.f32.mrb[0].mxu0
    %v347 = vadd.f32 0.0, %v346
    %v348 = vpop.f32.mrb[0].mxu0
    %349 = vdwg.mxu0
    %v351 = vrot.slane %v347, 4
    %v353 = vadd.f32 %v140, %v351
    %v354 = vxor.u32 %v274, 2147483648
    %v355 = vmul.f32 %v354, 1.442695
    %v356 = vpow.pop %v355
    %v357 = vadd.f32 %v356, 1.0
    %v358 = vrcp.pop %v357
    %v359 = vmul.f32 1.0, %v358
    %v360 = vxor.u32 %v353, 2147483648
    %v361 = vmul.f32 %v360, 1.442695
    %v362 = vpow.pop %v361
    %v363 = vadd.f32 %v362, 1.0
    %v364 = vrcp.pop %v363
    %v365 = vmul.f32 1.0, %v364
    %v366 = vtanh.pop %v274
    %v367 = vtanh.pop %v353
    %v369 = vrot.slane %v168, 6
    %370 = vrot.lane.b32.xlu0 %v369, 32
    %v371 = vpop.permute.xlu0 %370
    %v373 = vmul.f32 %v359, %v371
    %375 = vrot.lane.b32.xlu0 %v366, 64
    %v376 = vpop.permute.xlu0 %375
    %v378 = vmul.f32 %v359, %v376
    %380 = vrot.lane.b32.xlu0 %v378, 32
    %v381 = vpop.permute.xlu0 %380
    %v383 = vadd.f32 %v373, %v381
    %v385 = vrot.slane %v173, 2
    %386 = vrot.lane.b32.xlu0 %v385, 32
    %v387 = vpop.permute.xlu0 %386
    %v389 = vmul.f32 %v365, %v387
    %391 = vrot.lane.b32.xlu0 %v367, 64
    %v392 = vpop.permute.xlu0 %391
    %v394 = vmul.f32 %v365, %v392
    %396 = vrot.lane.b32.xlu0 %v394, 32
    %v397 = vpop.permute.xlu0 %396
    %v399 = vadd.f32 %v389, %v397
    %v400 = vtanh.pop %v383
    %402 = vrot.lane.b32.xlu0 %v400, 64
    %v403 = vpop.permute.xlu0 %402
    %v405 = vmul.f32 %v359, %v403
    %v406 = vtanh.pop %v399
    %408 = vrot.lane.b32.xlu0 %v406, 64
    %v409 = vpop.permute.xlu0 %408
    %v411 = vmul.f32 %v365, %v409
    %413 = vrot.lane.b32.xlu0 %v405, 32
    %v414 = vpop.permute.xlu0 %413
    %vm416 = vcmask 257026
    %417 = vst.msk [vmem:[#allocation2] sm:$0xc] %vm416, %v414
    %419 = vrot.lane.b32.xlu0 %v411, 64
    %v420 = vpop.permute.xlu0 %419
    %vm422 = vcmask 521476
    %423 = vst.msk [vmem:[#allocation2 + $0x8] sm:$0x30] %vm422, %v420
    %v424 = vrot.slane %v405, 2
    %425 = vrot.lane.b32.xlu0 %v424, 32
    %v426 = vpop.permute.xlu0 %425
    %v427 = vsel %vm198, %v426, 0
    %429 = vmatprep.subr.mxu0 0.0
    %430 = vmatpush1.msra.mxu0 %v142
    %431 = vmatprep.subr.mxu0 0.0
    %432 = vmatpush1.msra.mxu0 %v143
    %433 = vmatprep.subr.mxu0 0.0
    %434 = vmatpush1.msra.mxu0 %v144
    %435 = vmatprep.subr.mxu0 0.0
    %436 = vmatpush1.msra.mxu0 %v145
    %437 = vmatprep.subr.mxu0 0.0
    %438 = vmatpush1.msra.mxu0 0.0
    %439 = vmatprep.subr.mxu0 0.0
    %440 = vmatpush1.msra.mxu0 0.0
    %441 = vmatprep.subr.mxu0 0.0
    %442 = vmatpush1.msra.mxu0 0.0
    %443 = vmatprep.subr.mxu0 0.0
    %444 = vmatpush1.msra.mxu0 0.0
    %445 = vmatprep.subr.mxu0 0.0
    %446 = vmatpush1.msra.mxu0 0.0
    %447 = vmatprep.subr.mxu0 0.0
    %448 = vmatpush1.msra.mxu0 0.0
    %449 = vmatprep.subr.mxu0 0.0
    %450 = vmatpush1.msra.mxu0 0.0
    %451 = vmatprep.subr.mxu0 0.0
    %452 = vmatpush1.msra.mxu0 0.0
    %453 = vmatprep.subr.mxu0 0.0
    %454 = vmatpush1.msra.mxu0 0.0
    %455 = vmatprep.subr.mxu0 0.0
    %456 = vmatpush1.msra.mxu0 0.0
    %457 = vmatprep.subr.mxu0 0.0
    %458 = vmatpush1.msra.mxu0 0.0
    %459 = vmatprep.subr.mxu0 0.0
    %460 = vmatpush1.msra.mxu0 0.0
    %461 = vmatprep.subr.mxu0 0.0
    %462 = vmatpush1.msra.mxu0 0.0
    %463 = vmatprep.subr.mxu0 0.0
    %464 = vmatpush1.msra.mxu0 0.0
    %465 = vmatprep.subr.mxu0 0.0
    %466 = vmatpush1.msra.mxu0 0.0
    %467 = vmatprep.subr.mxu0 0.0
    %468 = vmatpush1.msra.mxu0 0.0
    %469 = vmatprep.subr.mxu0 0.0
    %470 = vmatpush1.msra.mxu0 0.0
    %471 = vmatprep.subr.mxu0 0.0
    %472 = vmatpush1.msra.mxu0 0.0
    %473 = vmatprep.subr.mxu0 0.0
    %474 = vmatpush1.msra.mxu0 0.0
    %475 = vmatprep.subr.mxu0 0.0
    %476 = vmatpush1.msra.mxu0 0.0
    %477 = vmatprep.subr.mxu0 0.0
    %478 = vmatpush1.msra.mxu0 0.0
    %479 = vmatprep.subr.mxu0 0.0
    %480 = vmatpush1.msra.mxu0 0.0
    %481 = vmatprep.subr.mxu0 0.0
    %482 = vmatpush1.msra.mxu0 0.0
    %483 = vmatprep.subr.mxu0 0.0
    %484 = vmatpush1.msra.mxu0 0.0
    %485 = vmatprep.subr.mxu0 0.0
    %486 = vmatpush1.msra.mxu0 0.0
    %487 = vmatprep.subr.mxu0 0.0
    %488 = vmatpush1.msra.mxu0 0.0
    %489 = vmatprep.subr.mxu0 0.0
    %490 = vmatpush1.msra.mxu0 0.0
    %491 = vmatprep.subr.mxu0 0.0
    %492 = vmatpush1.msra.mxu0 0.0
    %493 = vmatprep.mubr.f32.mxu0 0.0
    %494 = vmatmul.mubr.f32.gmra.mrb[0].mxu0 %v427
    %v495 = vpop.f32.mrb[0].mxu0
    %v496 = vadd.f32 0.0, %v495
    %v497 = vpop.f32.mrb[0].mxu0
    %498 = vdwg.mxu0
    %v500 = vrot.slane %v496, 4
    %v502 = vadd.f32 %v132, %v500
    %v503 = vrot.slane %v411, 4
    %504 = vrot.lane.b32.xlu0 %v503, 32
    %v505 = vpop.permute.xlu0 %504
    %v506 = vsel %vm198, %v505, 0
    %508 = vmatprep.subr.mxu0 0.0
    %509 = vmatpush1.msra.mxu0 %v146
    %510 = vmatprep.subr.mxu0 0.0
    %511 = vmatpush1.msra.mxu0 %v147
    %512 = vmatprep.subr.mxu0 0.0
    %513 = vmatpush1.msra.mxu0 %v148
    %514 = vmatprep.subr.mxu0 0.0
    %515 = vmatpush1.msra.mxu0 %v149
    %516 = vmatprep.subr.mxu0 0.0
    %517 = vmatpush1.msra.mxu0 0.0
    %518 = vmatprep.subr.mxu0 0.0
    %519 = vmatpush1.msra.mxu0 0.0
    %520 = vmatprep.subr.mxu0 0.0
    %521 = vmatpush1.msra.mxu0 0.0
    %522 = vmatprep.subr.mxu0 0.0
    %523 = vmatpush1.msra.mxu0 0.0
    %524 = vmatprep.subr.mxu0 0.0
    %525 = vmatpush1.msra.mxu0 0.0
    %526 = vmatprep.subr.mxu0 0.0
    %527 = vmatpush1.msra.mxu0 0.0
    %528 = vmatprep.subr.mxu0 0.0
    %529 = vmatpush1.msra.mxu0 0.0
    %530 = vmatprep.subr.mxu0 0.0
    %531 = vmatpush1.msra.mxu0 0.0
    %532 = vmatprep.subr.mxu0 0.0
    %533 = vmatpush1.msra.mxu0 0.0
    %534 = vmatprep.subr.mxu0 0.0
    %535 = vmatpush1.msra.mxu0 0.0
    %536 = vmatprep.subr.mxu0 0.0
    %537 = vmatpush1.msra.mxu0 0.0
    %538 = vmatprep.subr.mxu0 0.0
    %539 = vmatpush1.msra.mxu0 0.0
    %540 = vmatprep.subr.mxu0 0.0
    %541 = vmatpush1.msra.mxu0 0.0
    %542 = vmatprep.subr.mxu0 0.0
    %543 = vmatpush1.msra.mxu0 0.0
    %544 = vmatprep.subr.mxu0 0.0
    %545 = vmatpush1.msra.mxu0 0.0
    %546 = vmatprep.subr.mxu0 0.0
    %547 = vmatpush1.msra.mxu0 0.0
    %548 = vmatprep.subr.mxu0 0.0
    %549 = vmatpush1.msra.mxu0 0.0
    %550 = vmatprep.subr.mxu0 0.0
    %551 = vmatpush1.msra.mxu0 0.0
    %552 = vmatprep.subr.mxu0 0.0
    %553 = vmatpush1.msra.mxu0 0.0
    %554 = vmatprep.subr.mxu0 0.0
    %555 = vmatpush1.msra.mxu0 0.0
    %556 = vmatprep.subr.mxu0 0.0
    %557 = vmatpush1.msra.mxu0 0.0
    %558 = vmatprep.subr.mxu0 0.0
    %559 = vmatpush1.msra.mxu0 0.0
    %560 = vmatprep.subr.mxu0 0.0
    %561 = vmatpush1.msra.mxu0 0.0
    %562 = vmatprep.subr.mxu0 0.0
    %563 = vmatpush1.msra.mxu0 0.0
    %564 = vmatprep.subr.mxu0 0.0
    %565 = vmatpush1.msra.mxu0 0.0
    %566 = vmatprep.subr.mxu0 0.0
    %567 = vmatpush1.msra.mxu0 0.0
    %568 = vmatprep.subr.mxu0 0.0
    %569 = vmatpush1.msra.mxu0 0.0
    %570 = vmatprep.subr.mxu0 0.0
    %571 = vmatpush1.msra.mxu0 0.0
    %572 = vmatprep.mubr.f32.mxu0 0.0
    %573 = vmatmul.mubr.f32.gmra.mrb[0].mxu0 %v506
    %v574 = vpop.f32.mrb[0].mxu0
    %v575 = vadd.f32 0.0, %v574
    %v576 = vpop.f32.mrb[0].mxu0
    %577 = vdwg.mxu0
    %v579 = vrot.slane %v575, 6
    %v581 = vadd.f32 %v140, %v579
    %v582 = vxor.u32 %v502, 2147483648
    %v583 = vmul.f32 %v582, 1.442695
    %v584 = vpow.pop %v583
    %v585 = vadd.f32 %v584, 1.0
    %v586 = vrcp.pop %v585
    %v587 = vmul.f32 1.0, %v586
    %v588 = vxor.u32 %v581, 2147483648
    %v589 = vmul.f32 %v588, 1.442695
    %v590 = vpow.pop %v589
    %v591 = vadd.f32 %v590, 1.0
    %v592 = vrcp.pop %v591
    %v593 = vmul.f32 1.0, %v592
    %v594 = vtanh.pop %v502
    %v595 = vtanh.pop %v581
    %v597 = vrot.slane %v383, 6
    %v599 = vmul.f32 %v587, %v597
    %601 = vrot.lane.b32.xlu0 %v594, 64
    %v602 = vpop.permute.xlu0 %601
    %v604 = vmul.f32 %v587, %v602
    %606 = vrot.lane.b32.xlu0 %v604, 32
    %v607 = vpop.permute.xlu0 %606
    %v609 = vadd.f32 %v599, %v607
    %v611 = vrot.slane %v399, 2
    %v613 = vmul.f32 %v593, %v611
    %615 = vrot.lane.b32.xlu0 %v595, 64
    %v616 = vpop.permute.xlu0 %615
    %v618 = vmul.f32 %v593, %v616
    %620 = vrot.lane.b32.xlu0 %v618, 32
    %v621 = vpop.permute.xlu0 %620
    %v623 = vadd.f32 %v613, %v621
    %v624 = vtanh.pop %v609
    %626 = vrot.lane.b32.xlu0 %v624, 64
    %v627 = vpop.permute.xlu0 %626
    %v629 = vmul.f32 %v587, %v627
    %v630 = vtanh.pop %v623
    %632 = vrot.lane.b32.xlu0 %v630, 64
    %v633 = vpop.permute.xlu0 %632
    %v635 = vmul.f32 %v593, %v633
    %637 = vrot.lane.b32.xlu0 %v629, 32
    %v638 = vpop.permute.xlu0 %637
    %vm640 = vcmask 259076
    %641 = vst.msk [vmem:[#allocation2] sm:$0x30] %vm640, %v638
    %643 = vrot.lane.b32.xlu0 %v635, 64
    %v644 = vpop.permute.xlu0 %643
    %vm646 = vcmask 519426
    %647 = vst.msk [vmem:[#allocation2 + $0x8] sm:$0xc] %vm646, %v644
    %v648 = vrot.slane %v629, 4
    %649 = vrot.lane.b32.xlu0 %v648, 32
    %v650 = vpop.permute.xlu0 %649
    %v651 = vsel %vm198, %v650, 0
    %653 = vmatprep.subr.mxu0 0.0
    %654 = vmatpush1.msra.mxu0 %v142
    %655 = vmatprep.subr.mxu0 0.0
    %656 = vmatpush1.msra.mxu0 %v143
    %657 = vmatprep.subr.mxu0 0.0
    %658 = vmatpush1.msra.mxu0 %v144
    %659 = vmatprep.subr.mxu0 0.0
    %660 = vmatpush1.msra.mxu0 %v145
    %661 = vmatprep.subr.mxu0 0.0
    %662 = vmatpush1.msra.mxu0 0.0
    %663 = vmatprep.subr.mxu0 0.0
    %664 = vmatpush1.msra.mxu0 0.0
    %665 = vmatprep.subr.mxu0 0.0
    %666 = vmatpush1.msra.mxu0 0.0
    %667 = vmatprep.subr.mxu0 0.0
    %668 = vmatpush1.msra.mxu0 0.0
    %669 = vmatprep.subr.mxu0 0.0
    %670 = vmatpush1.msra.mxu0 0.0
    %671 = vmatprep.subr.mxu0 0.0
    %672 = vmatpush1.msra.mxu0 0.0
    %673 = vmatprep.subr.mxu0 0.0
    %674 = vmatpush1.msra.mxu0 0.0
    %675 = vmatprep.subr.mxu0 0.0
    %676 = vmatpush1.msra.mxu0 0.0
    %677 = vmatprep.subr.mxu0 0.0
    %678 = vmatpush1.msra.mxu0 0.0
    %679 = vmatprep.subr.mxu0 0.0
    %680 = vmatpush1.msra.mxu0 0.0
    %681 = vmatprep.subr.mxu0 0.0
    %682 = vmatpush1.msra.mxu0 0.0
    %683 = vmatprep.subr.mxu0 0.0
    %684 = vmatpush1.msra.mxu0 0.0
    %685 = vmatprep.subr.mxu0 0.0
    %686 = vmatpush1.msra.mxu0 0.0
    %687 = vmatprep.subr.mxu0 0.0
    %688 = vmatpush1.msra.mxu0 0.0
    %689 = vmatprep.subr.mxu0 0.0
    %690 = vmatpush1.msra.mxu0 0.0
    %691 = vmatprep.subr.mxu0 0.0
    %692 = vmatpush1.msra.mxu0 0.0
    %693 = vmatprep.subr.mxu0 0.0
    %694 = vmatpush1.msra.mxu0 0.0
    %695 = vmatprep.subr.mxu0 0.0
    %696 = vmatpush1.msra.mxu0 0.0
    %697 = vmatprep.subr.mxu0 0.0
    %698 = vmatpush1.msra.mxu0 0.0
    %699 = vmatprep.subr.mxu0 0.0
    %700 = vmatpush1.msra.mxu0 0.0
    %701 = vmatprep.subr.mxu0 0.0
    %702 = vmatpush1.msra.mxu0 0.0
    %703 = vmatprep.subr.mxu0 0.0
    %704 = vmatpush1.msra.mxu0 0.0
    %705 = vmatprep.subr.mxu0 0.0
    %706 = vmatpush1.msra.mxu0 0.0
    %707 = vmatprep.subr.mxu0 0.0
    %708 = vmatpush1.msra.mxu0 0.0
    %709 = vmatprep.subr.mxu0 0.0
    %710 = vmatpush1.msra.mxu0 0.0
    %711 = vmatprep.subr.mxu0 0.0
    %712 = vmatpush1.msra.mxu0 0.0
    %713 = vmatprep.subr.mxu0 0.0
    %714 = vmatpush1.msra.mxu0 0.0
    %715 = vmatprep.subr.mxu0 0.0
    %716 = vmatpush1.msra.mxu0 0.0
    %717 = vmatprep.mubr.f32.mxu0 0.0
    %718 = vmatmul.mubr.f32.gmra.mrb[0].mxu0 %v651
    %v719 = vpop.f32.mrb[0].mxu0
    %v720 = vadd.f32 0.0, %v719
    %v721 = vpop.f32.mrb[0].mxu0
    %722 = vdwg.mxu0
    %v724 = vrot.slane %v720, 2
    %v726 = vadd.f32 %v132, %v724
    %v727 = vrot.slane %v635, 2
    %728 = vrot.lane.b32.xlu0 %v727, 32
    %v729 = vpop.permute.xlu0 %728
    %v730 = vsel %vm198, %v729, 0
    %732 = vmatprep.subr.mxu0 0.0
    %733 = vmatpush1.msra.mxu0 %v146
    %734 = vmatprep.subr.mxu0 0.0
    %735 = vmatpush1.msra.mxu0 %v147
    %736 = vmatprep.subr.mxu0 0.0
    %737 = vmatpush1.msra.mxu0 %v148
    %738 = vmatprep.subr.mxu0 0.0
    %739 = vmatpush1.msra.mxu0 %v149
    %740 = vmatprep.subr.mxu0 0.0
    %741 = vmatpush1.msra.mxu0 0.0
    %742 = vmatprep.subr.mxu0 0.0
    %743 = vmatpush1.msra.mxu0 0.0
    %744 = vmatprep.subr.mxu0 0.0
    %745 = vmatpush1.msra.mxu0 0.0
    %746 = vmatprep.subr.mxu0 0.0
    %747 = vmatpush1.msra.mxu0 0.0
    %748 = vmatprep.subr.mxu0 0.0
    %749 = vmatpush1.msra.mxu0 0.0
    %750 = vmatprep.subr.mxu0 0.0
    %751 = vmatpush1.msra.mxu0 0.0
    %752 = vmatprep.subr.mxu0 0.0
    %753 = vmatpush1.msra.mxu0 0.0
    %754 = vmatprep.subr.mxu0 0.0
    %755 = vmatpush1.msra.mxu0 0.0
    %756 = vmatprep.subr.mxu0 0.0
    %757 = vmatpush1.msra.mxu0 0.0
    %758 = vmatprep.subr.mxu0 0.0
    %759 = vmatpush1.msra.mxu0 0.0
    %760 = vmatprep.subr.mxu0 0.0
    %761 = vmatpush1.msra.mxu0 0.0
    %762 = vmatprep.subr.mxu0 0.0
    %763 = vmatpush1.msra.mxu0 0.0
    %764 = vmatprep.subr.mxu0 0.0
    %765 = vmatpush1.msra.mxu0 0.0
    %766 = vmatprep.subr.mxu0 0.0
    %767 = vmatpush1.msra.mxu0 0.0
    %768 = vmatprep.subr.mxu0 0.0
    %769 = vmatpush1.msra.mxu0 0.0
    %770 = vmatprep.subr.mxu0 0.0
    %771 = vmatpush1.msra.mxu0 0.0
    %772 = vmatprep.subr.mxu0 0.0
    %773 = vmatpush1.msra.mxu0 0.0
    %774 = vmatprep.subr.mxu0 0.0
    %775 = vmatpush1.msra.mxu0 0.0
    %776 = vmatprep.subr.mxu0 0.0
    %777 = vmatpush1.msra.mxu0 0.0
    %778 = vmatprep.subr.mxu0 0.0
    %779 = vmatpush1.msra.mxu0 0.0
    %780 = vmatprep.subr.mxu0 0.0
    %781 = vmatpush1.msra.mxu0 0.0
    %782 = vmatprep.subr.mxu0 0.0
    %783 = vmatpush1.msra.mxu0 0.0
    %784 = vmatprep.subr.mxu0 0.0
    %785 = vmatpush1.msra.mxu0 0.0
    %786 = vmatprep.subr.mxu0 0.0
    %787 = vmatpush1.msra.mxu0 0.0
    %788 = vmatprep.subr.mxu0 0.0
    %789 = vmatpush1.msra.mxu0 0.0
    %790 = vmatprep.subr.mxu0 0.0
    %791 = vmatpush1.msra.mxu0 0.0
    %792 = vmatprep.subr.mxu0 0.0
    %793 = vmatpush1.msra.mxu0 0.0
    %794 = vmatprep.subr.mxu0 0.0
    %795 = vmatpush1.msra.mxu0 0.0
    %796 = vmatprep.mubr.f32.mxu0 0.0
    %797 = vmatmul.mubr.f32.gmra.mrb[0].mxu0 %v730
    %v798 = vpop.f32.mrb[0].mxu0
    %v799 = vadd.f32 0.0, %v798
    %v800 = vpop.f32.mrb[0].mxu0
    %801 = vdwg.mxu0
    %v802 = vadd.f32 %v140, %v799
    %v803 = vxor.u32 %v726, 2147483648
    %v804 = vmul.f32 %v803, 1.442695
    %v805 = vpow.pop %v804
    %v806 = vadd.f32 %v805, 1.0
    %v807 = vrcp.pop %v806
    %v808 = vmul.f32 1.0, %v807
    %v809 = vxor.u32 %v802, 2147483648
    %v810 = vmul.f32 %v809, 1.442695
    %v811 = vpow.pop %v810
    %v812 = vadd.f32 %v811, 1.0
    %v813 = vrcp.pop %v812
    %v814 = vmul.f32 1.0, %v813
    %v815 = vtanh.pop %v726
    %v816 = vtanh.pop %v802
    %v818 = vrot.slane %v609, 6
    %v820 = vmul.f32 %v808, %v818
    %822 = vrot.lane.b32.xlu0 %v815, 64
    %v823 = vpop.permute.xlu0 %822
    %v825 = vmul.f32 %v808, %v823
    %827 = vrot.lane.b32.xlu0 %v825, 32
    %v828 = vpop.permute.xlu0 %827
    %v830 = vadd.f32 %v820, %v828
    %v832 = vrot.slane %v623, 2
    %v834 = vmul.f32 %v814, %v832
    %836 = vrot.lane.b32.xlu0 %v816, 64
    %v837 = vpop.permute.xlu0 %836
    %v839 = vmul.f32 %v814, %v837
    %841 = vrot.lane.b32.xlu0 %v839, 32
    %v842 = vpop.permute.xlu0 %841
    %v844 = vadd.f32 %v834, %v842
    %v845 = vtanh.pop %v830
    %847 = vrot.lane.b32.xlu0 %v845, 64
    %v848 = vpop.permute.xlu0 %847
    %v850 = vmul.f32 %v808, %v848
    %v851 = vtanh.pop %v844
    %853 = vrot.lane.b32.xlu0 %v851, 64
    %v854 = vpop.permute.xlu0 %853
    %v856 = vmul.f32 %v814, %v854
    %858 = vrot.lane.b32.xlu0 %v850, 32
    %v859 = vpop.permute.xlu0 %858
    %vm861 = vcmask 261126
    %862 = vst.msk [vmem:[#allocation2] sm:$0xc0] %vm861, %v859
    %864 = vrot.lane.b32.xlu0 %v856, 64
    %v865 = vpop.permute.xlu0 %864
    %vm867 = vcmask 517376
    %868 = vst.msk [vmem:[#allocation2 + $0x8] sm:$0x3] %vm867, %v865
    %v869 = vrot.slane %v850, 6
    %870 = vrot.lane.b32.xlu0 %v869, 32
    %v871 = vpop.permute.xlu0 %870
    %v872 = vsel %vm198, %v871, 0
    %874 = vmatprep.subr.mxu0 0.0
    %875 = vmatpush1.msra.mxu0 %v142
    %876 = vmatprep.subr.mxu0 0.0
    %877 = vmatpush1.msra.mxu0 %v143
    %878 = vmatprep.subr.mxu0 0.0
    %879 = vmatpush1.msra.mxu0 %v144
    %880 = vmatprep.subr.mxu0 0.0
    %881 = vmatpush1.msra.mxu0 %v145
    %882 = vmatprep.subr.mxu0 0.0
    %883 = vmatpush1.msra.mxu0 0.0
    %884 = vmatprep.subr.mxu0 0.0
    %885 = vmatpush1.msra.mxu0 0.0
    %886 = vmatprep.subr.mxu0 0.0
    %887 = vmatpush1.msra.mxu0 0.0
    %888 = vmatprep.subr.mxu0 0.0
    %889 = vmatpush1.msra.mxu0 0.0
    %890 = vmatprep.subr.mxu0 0.0
    %891 = vmatpush1.msra.mxu0 0.0
    %892 = vmatprep.subr.mxu0 0.0
    %893 = vmatpush1.msra.mxu0 0.0
    %894 = vmatprep.subr.mxu0 0.0
    %895 = vmatpush1.msra.mxu0 0.0
    %896 = vmatprep.subr.mxu0 0.0
    %897 = vmatpush1.msra.mxu0 0.0
    %898 = vmatprep.subr.mxu0 0.0
    %899 = vmatpush1.msra.mxu0 0.0
    %900 = vmatprep.subr.mxu0 0.0
    %901 = vmatpush1.msra.mxu0 0.0
    %902 = vmatprep.subr.mxu0 0.0
    %903 = vmatpush1.msra.mxu0 0.0
    %904 = vmatprep.subr.mxu0 0.0
    %905 = vmatpush1.msra.mxu0 0.0
    %906 = vmatprep.subr.mxu0 0.0
    %907 = vmatpush1.msra.mxu0 0.0
    %908 = vmatprep.subr.mxu0 0.0
    %909 = vmatpush1.msra.mxu0 0.0
    %910 = vmatprep.subr.mxu0 0.0
    %911 = vmatpush1.msra.mxu0 0.0
    %912 = vmatprep.subr.mxu0 0.0
    %913 = vmatpush1.msra.mxu0 0.0
    %914 = vmatprep.subr.mxu0 0.0
    %915 = vmatpush1.msra.mxu0 0.0
    %916 = vmatprep.subr.mxu0 0.0
    %917 = vmatpush1.msra.mxu0 0.0
    %918 = vmatprep.subr.mxu0 0.0
    %919 = vmatpush1.msra.mxu0 0.0
    %920 = vmatprep.subr.mxu0 0.0
    %921 = vmatpush1.msra.mxu0 0.0
    %922 = vmatprep.subr.mxu0 0.0
    %923 = vmatpush1.msra.mxu0 0.0
    %924 = vmatprep.subr.mxu0 0.0
    %925 = vmatpush1.msra.mxu0 0.0
    %926 = vmatprep.subr.mxu0 0.0
    %927 = vmatpush1.msra.mxu0 0.0
    %928 = vmatprep.subr.mxu0 0.0
    %929 = vmatpush1.msra.mxu0 0.0
    %930 = vmatprep.subr.mxu0 0.0
    %931 = vmatpush1.msra.mxu0 0.0
    %932 = vmatprep.subr.mxu0 0.0
    %933 = vmatpush1.msra.mxu0 0.0
    %934 = vmatprep.subr.mxu0 0.0
    %935 = vmatpush1.msra.mxu0 0.0
    %936 = vmatprep.subr.mxu0 0.0
    %937 = vmatpush1.msra.mxu0 0.0
    %938 = vmatprep.mubr.f32.mxu0 0.0
    %939 = vmatmul.mubr.f32.gmra.mrb[0].mxu0 %v872
    %v940 = vpop.f32.mrb[0].mxu0
    %v941 = vadd.f32 0.0, %v940
    %v942 = vpop.f32.mrb[0].mxu0
    %943 = vdwg.mxu0
    %v944 = vadd.f32 %v138, %v941
    %945 = vrot.lane.b32.xlu0 %v856, 32
    %v946 = vpop.permute.xlu0 %945
    %v947 = vsel %vm198, %v946, 0
    %949 = vmatprep.subr.mxu0 0.0
    %950 = vmatpush1.msra.mxu0 %v146
    %951 = vmatprep.subr.mxu0 0.0
    %952 = vmatpush1.msra.mxu0 %v147
    %953 = vmatprep.subr.mxu0 0.0
    %954 = vmatpush1.msra.mxu0 %v148
    %955 = vmatprep.subr.mxu0 0.0
    %956 = vmatpush1.msra.mxu0 %v149
    %957 = vmatprep.subr.mxu0 0.0
    %958 = vmatpush1.msra.mxu0 0.0
    %959 = vmatprep.subr.mxu0 0.0
    %960 = vmatpush1.msra.mxu0 0.0
    %961 = vmatprep.subr.mxu0 0.0
    %962 = vmatpush1.msra.mxu0 0.0
    %963 = vmatprep.subr.mxu0 0.0
    %964 = vmatpush1.msra.mxu0 0.0
    %965 = vmatprep.subr.mxu0 0.0
    %966 = vmatpush1.msra.mxu0 0.0
    %967 = vmatprep.subr.mxu0 0.0
    %968 = vmatpush1.msra.mxu0 0.0
    %969 = vmatprep.subr.mxu0 0.0
    %970 = vmatpush1.msra.mxu0 0.0
    %971 = vmatprep.subr.mxu0 0.0
    %972 = vmatpush1.msra.mxu0 0.0
    %973 = vmatprep.subr.mxu0 0.0
    %974 = vmatpush1.msra.mxu0 0.0
    %975 = vmatprep.subr.mxu0 0.0
    %976 = vmatpush1.msra.mxu0 0.0
    %977 = vmatprep.subr.mxu0 0.0
    %978 = vmatpush1.msra.mxu0 0.0
    %979 = vmatprep.subr.mxu0 0.0
    %980 = vmatpush1.msra.mxu0 0.0
    %981 = vmatprep.subr.mxu0 0.0
    %982 = vmatpush1.msra.mxu0 0.0
    %983 = vmatprep.subr.mxu0 0.0
    %984 = vmatpush1.msra.mxu0 0.0
    %985 = vmatprep.subr.mxu0 0.0
    %986 = vmatpush1.msra.mxu0 0.0
    %987 = vmatprep.subr.mxu0 0.0
    %988 = vmatpush1.msra.mxu0 0.0
    %989 = vmatprep.subr.mxu0 0.0
    %990 = vmatpush1.msra.mxu0 0.0
    %991 = vmatprep.subr.mxu0 0.0
    %992 = vmatpush1.msra.mxu0 0.0
    %993 = vmatprep.subr.mxu0 0.0
    %994 = vmatpush1.msra.mxu0 0.0
    %995 = vmatprep.subr.mxu0 0.0
    %996 = vmatpush1.msra.mxu0 0.0
    %997 = vmatprep.subr.mxu0 0.0
    %998 = vmatpush1.msra.mxu0 0.0
    %999 = vmatprep.subr.mxu0 0.0
    %1000 = vmatpush1.msra.mxu0 0.0
    %1001 = vmatprep.subr.mxu0 0.0
    %1002 = vmatpush1.msra.mxu0 0.0
    %1003 = vmatprep.subr.mxu0 0.0
    %1004 = vmatpush1.msra.mxu0 0.0
    %1005 = vmatprep.subr.mxu0 0.0
    %1006 = vmatpush1.msra.mxu0 0.0
    %1007 = vmatprep.subr.mxu0 0.0
    %1008 = vmatpush1.msra.mxu0 0.0
    %1009 = vmatprep.subr.mxu0 0.0
    %1010 = vmatpush1.msra.mxu0 0.0
    %1011 = vmatprep.subr.mxu0 0.0
    %1012 = vmatpush1.msra.mxu0 0.0
    %1013 = vmatprep.mubr.f32.mxu0 0.0
    %1014 = vmatmul.mubr.f32.gmra.mrb[0].mxu0 %v947
    %v1015 = vpop.f32.mrb[0].mxu0
    %v1016 = vadd.f32 0.0, %v1015
    %v1017 = vpop.f32.mrb[0].mxu0
    %1018 = vdwg.mxu0
    %v1020 = vrot.slane %v1016, 2
    %v1022 = vadd.f32 %v134, %v1020
    %v1023 = vxor.u32 %v944, 2147483648
    %v1024 = vmul.f32 %v1023, 1.442695
    %v1025 = vpow.pop %v1024
    %v1026 = vadd.f32 %v1025, 1.0
    %v1027 = vrcp.pop %v1026
    %v1028 = vmul.f32 1.0, %v1027
    %v1029 = vxor.u32 %v1022, 2147483648
    %v1030 = vmul.f32 %v1029, 1.442695
    %v1031 = vpow.pop %v1030
    %v1032 = vadd.f32 %v1031, 1.0
    %v1033 = vrcp.pop %v1032
    %v1034 = vmul.f32 1.0, %v1033
    %v1035 = vtanh.pop %v944
    %v1036 = vtanh.pop %v1022
    %v1038 = vrot.slane %v830, 6
    %v1040 = vmul.f32 %v1028, %v1038
    %1042 = vrot.lane.b32.xlu0 %v1035, 64
    %v1043 = vpop.permute.xlu0 %1042
    %v1045 = vmul.f32 %v1028, %v1043
    %1047 = vrot.lane.b32.xlu0 %v1045, 32
    %v1048 = vpop.permute.xlu0 %1047
    %v1050 = vadd.f32 %v1040, %v1048
    %v1052 = vrot.slane %v844, 2
    %v1054 = vmul.f32 %v1034, %v1052
    %1056 = vrot.lane.b32.xlu0 %v1036, 64
    %v1057 = vpop.permute.xlu0 %1056
    %v1059 = vmul.f32 %v1034, %v1057
    %1061 = vrot.lane.b32.xlu0 %v1059, 32
    %v1062 = vpop.permute.xlu0 %1061
    %v1064 = vadd.f32 %v1054, %v1062
    %v1065 = vtanh.pop %v1050
    %1067 = vrot.lane.b32.xlu0 %v1065, 64
    %v1068 = vpop.permute.xlu0 %1067
    %v1070 = vmul.f32 %v1028, %v1068
    %v1071 = vtanh.pop %v1064
    %1073 = vrot.lane.b32.xlu0 %v1071, 64
    %v1074 = vpop.permute.xlu0 %1073
    %v1076 = vmul.f32 %v1034, %v1074
    %1078 = vrot.lane.b32.xlu0 %v1070, 32
    %v1079 = vpop.permute.xlu0 %1078
    %1081 = vst.msk [vmem:[#allocation2 + $0x8] sm:$0x3] %vm190, %v1079
    %1083 = vrot.lane.b32.xlu0 %v1076, 64
    %v1084 = vpop.permute.xlu0 %1083
    %1086 = vst.msk [vmem:[#allocation2] sm:$0xc0] %vm196, %v1084
    %v1087 = vsel %vm198, %v1079, 0
    %1089 = vmatprep.subr.mxu0 0.0
    %1090 = vmatpush1.msra.mxu0 %v142
    %1091 = vmatprep.subr.mxu0 0.0
    %1092 = vmatpush1.msra.mxu0 %v143
    %1093 = vmatprep.subr.mxu0 0.0
    %1094 = vmatpush1.msra.mxu0 %v144
    %1095 = vmatprep.subr.mxu0 0.0
    %1096 = vmatpush1.msra.mxu0 %v145
    %1097 = vmatprep.subr.mxu0 0.0
    %1098 = vmatpush1.msra.mxu0 0.0
    %1099 = vmatprep.subr.mxu0 0.0
    %1100 = vmatpush1.msra.mxu0 0.0
    %1101 = vmatprep.subr.mxu0 0.0
    %1102 = vmatpush1.msra.mxu0 0.0
    %1103 = vmatprep.subr.mxu0 0.0
    %1104 = vmatpush1.msra.mxu0 0.0
    %1105 = vmatprep.subr.mxu0 0.0
    %1106 = vmatpush1.msra.mxu0 0.0
    %1107 = vmatprep.subr.mxu0 0.0
    %1108 = vmatpush1.msra.mxu0 0.0
    %1109 = vmatprep.subr.mxu0 0.0
    %1110 = vmatpush1.msra.mxu0 0.0
    %1111 = vmatprep.subr.mxu0 0.0
    %1112 = vmatpush1.msra.mxu0 0.0
    %1113 = vmatprep.subr.mxu0 0.0
    %1114 = vmatpush1.msra.mxu0 0.0
    %1115 = vmatprep.subr.mxu0 0.0
    %1116 = vmatpush1.msra.mxu0 0.0
    %1117 = vmatprep.subr.mxu0 0.0
    %1118 = vmatpush1.msra.mxu0 0.0
    %1119 = vmatprep.subr.mxu0 0.0
    %1120 = vmatpush1.msra.mxu0 0.0
    %1121 = vmatprep.subr.mxu0 0.0
    %1122 = vmatpush1.msra.mxu0 0.0
    %1123 = vmatprep.subr.mxu0 0.0
    %1124 = vmatpush1.msra.mxu0 0.0
    %1125 = vmatprep.subr.mxu0 0.0
    %1126 = vmatpush1.msra.mxu0 0.0
    %1127 = vmatprep.subr.mxu0 0.0
    %1128 = vmatpush1.msra.mxu0 0.0
    %1129 = vmatprep.subr.mxu0 0.0
    %1130 = vmatpush1.msra.mxu0 0.0
    %1131 = vmatprep.subr.mxu0 0.0
    %1132 = vmatpush1.msra.mxu0 0.0
    %1133 = vmatprep.subr.mxu0 0.0
    %1134 = vmatpush1.msra.mxu0 0.0
    %1135 = vmatprep.subr.mxu0 0.0
    %1136 = vmatpush1.msra.mxu0 0.0
    %1137 = vmatprep.subr.mxu0 0.0
    %1138 = vmatpush1.msra.mxu0 0.0
    %1139 = vmatprep.subr.mxu0 0.0
    %1140 = vmatpush1.msra.mxu0 0.0
    %1141 = vmatprep.subr.mxu0 0.0
    %1142 = vmatpush1.msra.mxu0 0.0
    %1143 = vmatprep.subr.mxu0 0.0
    %1144 = vmatpush1.msra.mxu0 0.0
    %1145 = vmatprep.subr.mxu0 0.0
    %1146 = vmatpush1.msra.mxu0 0.0
    %1147 = vmatprep.subr.mxu0 0.0
    %1148 = vmatpush1.msra.mxu0 0.0
    %1149 = vmatprep.subr.mxu0 0.0
    %1150 = vmatpush1.msra.mxu0 0.0
    %1151 = vmatprep.subr.mxu0 0.0
    %1152 = vmatpush1.msra.mxu0 0.0
    %1153 = vmatprep.mubr.f32.mxu0 0.0
    %1154 = vmatmul.mubr.f32.gmra.mrb[0].mxu0 %v1087
    %v1155 = vpop.f32.mrb[0].mxu0
    %v1156 = vadd.f32 0.0, %v1155
    %v1157 = vpop.f32.mrb[0].mxu0
    %1158 = vdwg.mxu0
    %v1160 = vrot.slane %v1156, 6
    %v1162 = vadd.f32 %v138, %v1160
    %v1163 = vrot.slane %v1076, 6
    %1164 = vrot.lane.b32.xlu0 %v1163, 32
    %v1165 = vpop.permute.xlu0 %1164
    %v1166 = vsel %vm198, %v1165, 0
    %1168 = vmatprep.subr.mxu0 0.0
    %1169 = vmatpush1.msra.mxu0 %v146
    %1170 = vmatprep.subr.mxu0 0.0
    %1171 = vmatpush1.msra.mxu0 %v147
    %1172 = vmatprep.subr.mxu0 0.0
    %1173 = vmatpush1.msra.mxu0 %v148
    %1174 = vmatprep.subr.mxu0 0.0
    %1175 = vmatpush1.msra.mxu0 %v149
    %1176 = vmatprep.subr.mxu0 0.0
    %1177 = vmatpush1.msra.mxu0 0.0
    %1178 = vmatprep.subr.mxu0 0.0
    %1179 = vmatpush1.msra.mxu0 0.0
    %1180 = vmatprep.subr.mxu0 0.0
    %1181 = vmatpush1.msra.mxu0 0.0
    %1182 = vmatprep.subr.mxu0 0.0
    %1183 = vmatpush1.msra.mxu0 0.0
    %1184 = vmatprep.subr.mxu0 0.0
    %1185 = vmatpush1.msra.mxu0 0.0
    %1186 = vmatprep.subr.mxu0 0.0
    %1187 = vmatpush1.msra.mxu0 0.0
    %1188 = vmatprep.subr.mxu0 0.0
    %1189 = vmatpush1.msra.mxu0 0.0
    %1190 = vmatprep.subr.mxu0 0.0
    %1191 = vmatpush1.msra.mxu0 0.0
    %1192 = vmatprep.subr.mxu0 0.0
    %1193 = vmatpush1.msra.mxu0 0.0
    %1194 = vmatprep.subr.mxu0 0.0
    %1195 = vmatpush1.msra.mxu0 0.0
    %1196 = vmatprep.subr.mxu0 0.0
    %1197 = vmatpush1.msra.mxu0 0.0
    %1198 = vmatprep.subr.mxu0 0.0
    %1199 = vmatpush1.msra.mxu0 0.0
    %1200 = vmatprep.subr.mxu0 0.0
    %1201 = vmatpush1.msra.mxu0 0.0
    %1202 = vmatprep.subr.mxu0 0.0
    %1203 = vmatpush1.msra.mxu0 0.0
    %1204 = vmatprep.subr.mxu0 0.0
    %1205 = vmatpush1.msra.mxu0 0.0
    %1206 = vmatprep.subr.mxu0 0.0
    %1207 = vmatpush1.msra.mxu0 0.0
    %1208 = vmatprep.subr.mxu0 0.0
    %1209 = vmatpush1.msra.mxu0 0.0
    %1210 = vmatprep.subr.mxu0 0.0
    %1211 = vmatpush1.msra.mxu0 0.0
    %1212 = vmatprep.subr.mxu0 0.0
    %1213 = vmatpush1.msra.mxu0 0.0
    %1214 = vmatprep.subr.mxu0 0.0
    %1215 = vmatpush1.msra.mxu0 0.0
    %1216 = vmatprep.subr.mxu0 0.0
    %1217 = vmatpush1.msra.mxu0 0.0
    %1218 = vmatprep.subr.mxu0 0.0
    %1219 = vmatpush1.msra.mxu0 0.0
    %1220 = vmatprep.subr.mxu0 0.0
    %1221 = vmatpush1.msra.mxu0 0.0
    %1222 = vmatprep.subr.mxu0 0.0
    %1223 = vmatpush1.msra.mxu0 0.0
    %1224 = vmatprep.subr.mxu0 0.0
    %1225 = vmatpush1.msra.mxu0 0.0
    %1226 = vmatprep.subr.mxu0 0.0
    %1227 = vmatpush1.msra.mxu0 0.0
    %1228 = vmatprep.subr.mxu0 0.0
    %1229 = vmatpush1.msra.mxu0 0.0
    %1230 = vmatprep.subr.mxu0 0.0
    %1231 = vmatpush1.msra.mxu0 0.0
    %1232 = vmatprep.mubr.f32.mxu0 0.0
    %1233 = vmatmul.mubr.f32.gmra.mrb[0].mxu0 %v1166
    %v1234 = vpop.f32.mrb[0].mxu0
    %v1235 = vadd.f32 0.0, %v1234
    %v1236 = vpop.f32.mrb[0].mxu0
    %1237 = vdwg.mxu0
    %v1239 = vrot.slane %v1235, 4
    %v1241 = vadd.f32 %v134, %v1239
    %v1242 = vxor.u32 %v1162, 2147483648
    %v1243 = vmul.f32 %v1242, 1.442695
    %v1244 = vpow.pop %v1243
    %v1245 = vadd.f32 %v1244, 1.0
    %v1246 = vrcp.pop %v1245
    %v1247 = vmul.f32 1.0, %v1246
    %v1248 = vxor.u32 %v1241, 2147483648
    %v1249 = vmul.f32 %v1248, 1.442695
    %v1250 = vpow.pop %v1249
    %v1251 = vadd.f32 %v1250, 1.0
    %v1252 = vrcp.pop %v1251
    %v1253 = vmul.f32 1.0, %v1252
    %v1254 = vtanh.pop %v1162
    %v1255 = vtanh.pop %v1241
    %v1257 = vrot.slane %v1050, 6
    %v1259 = vmul.f32 %v1247, %v1257
    %1261 = vrot.lane.b32.xlu0 %v1254, 64
    %v1262 = vpop.permute.xlu0 %1261
    %v1264 = vmul.f32 %v1247, %v1262
    %1266 = vrot.lane.b32.xlu0 %v1264, 32
    %v1267 = vpop.permute.xlu0 %1266
    %v1269 = vadd.f32 %v1259, %v1267
    %v1271 = vrot.slane %v1064, 2
    %v1273 = vmul.f32 %v1253, %v1271
    %1275 = vrot.lane.b32.xlu0 %v1255, 64
    %v1276 = vpop.permute.xlu0 %1275
    %v1278 = vmul.f32 %v1253, %v1276
    %1280 = vrot.lane.b32.xlu0 %v1278, 32
    %v1281 = vpop.permute.xlu0 %1280
    %v1283 = vadd.f32 %v1273, %v1281
    %v1284 = vtanh.pop %v1269
    %1286 = vrot.lane.b32.xlu0 %v1284, 64
    %v1287 = vpop.permute.xlu0 %1286
    %v1289 = vmul.f32 %v1247, %v1287
    %v1290 = vtanh.pop %v1283
    %1292 = vrot.lane.b32.xlu0 %v1290, 64
    %v1293 = vpop.permute.xlu0 %1292
    %v1295 = vmul.f32 %v1253, %v1293
    %1297 = vrot.lane.b32.xlu0 %v1289, 32
    %v1298 = vpop.permute.xlu0 %1297
    %1300 = vst.msk [vmem:[#allocation2 + $0x8] sm:$0xc] %vm416, %v1298
    %1302 = vrot.lane.b32.xlu0 %v1295, 64
    %v1303 = vpop.permute.xlu0 %1302
    %1305 = vst.msk [vmem:[#allocation2] sm:$0x30] %vm422, %v1303
    %v1306 = vrot.slane %v1289, 2
    %1307 = vrot.lane.b32.xlu0 %v1306, 32
    %v1308 = vpop.permute.xlu0 %1307
    %v1309 = vsel %vm198, %v1308, 0
    %1311 = vmatprep.subr.mxu0 0.0
    %1312 = vmatpush1.msra.mxu0 %v142
    %1313 = vmatprep.subr.mxu0 0.0
    %1314 = vmatpush1.msra.mxu0 %v143
    %1315 = vmatprep.subr.mxu0 0.0
    %1316 = vmatpush1.msra.mxu0 %v144
    %1317 = vmatprep.subr.mxu0 0.0
    %1318 = vmatpush1.msra.mxu0 %v145
    %1319 = vmatprep.subr.mxu0 0.0
    %1320 = vmatpush1.msra.mxu0 0.0
    %1321 = vmatprep.subr.mxu0 0.0
    %1322 = vmatpush1.msra.mxu0 0.0
    %1323 = vmatprep.subr.mxu0 0.0
    %1324 = vmatpush1.msra.mxu0 0.0
    %1325 = vmatprep.subr.mxu0 0.0
    %1326 = vmatpush1.msra.mxu0 0.0
    %1327 = vmatprep.subr.mxu0 0.0
    %1328 = vmatpush1.msra.mxu0 0.0
    %1329 = vmatprep.subr.mxu0 0.0
    %1330 = vmatpush1.msra.mxu0 0.0
    %1331 = vmatprep.subr.mxu0 0.0
    %1332 = vmatpush1.msra.mxu0 0.0
    %1333 = vmatprep.subr.mxu0 0.0
    %1334 = vmatpush1.msra.mxu0 0.0
    %1335 = vmatprep.subr.mxu0 0.0
    %1336 = vmatpush1.msra.mxu0 0.0
    %1337 = vmatprep.subr.mxu0 0.0
    %1338 = vmatpush1.msra.mxu0 0.0
    %1339 = vmatprep.subr.mxu0 0.0
    %1340 = vmatpush1.msra.mxu0 0.0
    %1341 = vmatprep.subr.mxu0 0.0
    %1342 = vmatpush1.msra.mxu0 0.0
    %1343 = vmatprep.subr.mxu0 0.0
    %1344 = vmatpush1.msra.mxu0 0.0
    %1345 = vmatprep.subr.mxu0 0.0
    %1346 = vmatpush1.msra.mxu0 0.0
    %1347 = vmatprep.subr.mxu0 0.0
    %1348 = vmatpush1.msra.mxu0 0.0
    %1349 = vmatprep.subr.mxu0 0.0
    %1350 = vmatpush1.msra.mxu0 0.0
    %1351 = vmatprep.subr.mxu0 0.0
    %1352 = vmatpush1.msra.mxu0 0.0
    %1353 = vmatprep.subr.mxu0 0.0
    %1354 = vmatpush1.msra.mxu0 0.0
    %1355 = vmatprep.subr.mxu0 0.0
    %1356 = vmatpush1.msra.mxu0 0.0
    %1357 = vmatprep.subr.mxu0 0.0
    %1358 = vmatpush1.msra.mxu0 0.0
    %1359 = vmatprep.subr.mxu0 0.0
    %1360 = vmatpush1.msra.mxu0 0.0
    %1361 = vmatprep.subr.mxu0 0.0
    %1362 = vmatpush1.msra.mxu0 0.0
    %1363 = vmatprep.subr.mxu0 0.0
    %1364 = vmatpush1.msra.mxu0 0.0
    %1365 = vmatprep.subr.mxu0 0.0
    %1366 = vmatpush1.msra.mxu0 0.0
    %1367 = vmatprep.subr.mxu0 0.0
    %1368 = vmatpush1.msra.mxu0 0.0
    %1369 = vmatprep.subr.mxu0 0.0
    %1370 = vmatpush1.msra.mxu0 0.0
    %1371 = vmatprep.subr.mxu0 0.0
    %1372 = vmatpush1.msra.mxu0 0.0
    %1373 = vmatprep.subr.mxu0 0.0
    %1374 = vmatpush1.msra.mxu0 0.0
    %1375 = vmatprep.mubr.f32.mxu0 0.0
    %1376 = vmatmul.mubr.f32.gmra.mrb[0].mxu0 %v1309
    %v1377 = vpop.f32.mrb[0].mxu0
    %v1378 = vadd.f32 0.0, %v1377
    %v1379 = vpop.f32.mrb[0].mxu0
    %1380 = vdwg.mxu0
    %v1382 = vrot.slane %v1378, 4
    %v1384 = vadd.f32 %v138, %v1382
    %v1385 = vrot.slane %v1295, 4
    %1386 = vrot.lane.b32.xlu0 %v1385, 32
    %v1387 = vpop.permute.xlu0 %1386
    %v1388 = vsel %vm198, %v1387, 0
    %1390 = vmatprep.subr.mxu0 0.0
    %1391 = vmatpush1.msra.mxu0 %v146
    %1392 = vmatprep.subr.mxu0 0.0
    %1393 = vmatpush1.msra.mxu0 %v147
    %1394 = vmatprep.subr.mxu0 0.0
    %1395 = vmatpush1.msra.mxu0 %v148
    %1396 = vmatprep.subr.mxu0 0.0
    %1397 = vmatpush1.msra.mxu0 %v149
    %1398 = vmatprep.subr.mxu0 0.0
    %1399 = vmatpush1.msra.mxu0 0.0
    %1400 = vmatprep.subr.mxu0 0.0
    %1401 = vmatpush1.msra.mxu0 0.0
    %1402 = vmatprep.subr.mxu0 0.0
    %1403 = vmatpush1.msra.mxu0 0.0
    %1404 = vmatprep.subr.mxu0 0.0
    %1405 = vmatpush1.msra.mxu0 0.0
    %1406 = vmatprep.subr.mxu0 0.0
    %1407 = vmatpush1.msra.mxu0 0.0
    %1408 = vmatprep.subr.mxu0 0.0
    %1409 = vmatpush1.msra.mxu0 0.0
    %1410 = vmatprep.subr.mxu0 0.0
    %1411 = vmatpush1.msra.mxu0 0.0
    %1412 = vmatprep.subr.mxu0 0.0
    %1413 = vmatpush1.msra.mxu0 0.0
    %1414 = vmatprep.subr.mxu0 0.0
    %1415 = vmatpush1.msra.mxu0 0.0
    %1416 = vmatprep.subr.mxu0 0.0
    %1417 = vmatpush1.msra.mxu0 0.0
    %1418 = vmatprep.subr.mxu0 0.0
    %1419 = vmatpush1.msra.mxu0 0.0
    %1420 = vmatprep.subr.mxu0 0.0
    %1421 = vmatpush1.msra.mxu0 0.0
    %1422 = vmatprep.subr.mxu0 0.0
    %1423 = vmatpush1.msra.mxu0 0.0
    %1424 = vmatprep.subr.mxu0 0.0
    %1425 = vmatpush1.msra.mxu0 0.0
    %1426 = vmatprep.subr.mxu0 0.0
    %1427 = vmatpush1.msra.mxu0 0.0
    %1428 = vmatprep.subr.mxu0 0.0
    %1429 = vmatpush1.msra.mxu0 0.0
    %1430 = vmatprep.subr.mxu0 0.0
    %1431 = vmatpush1.msra.mxu0 0.0
    %1432 = vmatprep.subr.mxu0 0.0
    %1433 = vmatpush1.msra.mxu0 0.0
    %1434 = vmatprep.subr.mxu0 0.0
    %1435 = vmatpush1.msra.mxu0 0.0
    %1436 = vmatprep.subr.mxu0 0.0
    %1437 = vmatpush1.msra.mxu0 0.0
    %1438 = vmatprep.subr.mxu0 0.0
    %1439 = vmatpush1.msra.mxu0 0.0
    %1440 = vmatprep.subr.mxu0 0.0
    %1441 = vmatpush1.msra.mxu0 0.0
    %1442 = vmatprep.subr.mxu0 0.0
    %1443 = vmatpush1.msra.mxu0 0.0
    %1444 = vmatprep.subr.mxu0 0.0
    %1445 = vmatpush1.msra.mxu0 0.0
    %1446 = vmatprep.subr.mxu0 0.0
    %1447 = vmatpush1.msra.mxu0 0.0
    %1448 = vmatprep.subr.mxu0 0.0
    %1449 = vmatpush1.msra.mxu0 0.0
    %1450 = vmatprep.subr.mxu0 0.0
    %1451 = vmatpush1.msra.mxu0 0.0
    %1452 = vmatprep.subr.mxu0 0.0
    %1453 = vmatpush1.msra.mxu0 0.0
    %1454 = vmatprep.mubr.f32.mxu0 0.0
    %1455 = vmatmul.mubr.f32.gmra.mrb[0].mxu0 %v1388
    %v1456 = vpop.f32.mrb[0].mxu0
    %v1457 = vadd.f32 0.0, %v1456
    %v1458 = vpop.f32.mrb[0].mxu0
    %1459 = vdwg.mxu0
    %v1461 = vrot.slane %v1457, 6
    %v1463 = vadd.f32 %v134, %v1461
    %v1464 = vxor.u32 %v1384, 2147483648
    %v1465 = vmul.f32 %v1464, 1.442695
    %v1466 = vpow.pop %v1465
    %v1467 = vadd.f32 %v1466, 1.0
    %v1468 = vrcp.pop %v1467
    %v1469 = vmul.f32 1.0, %v1468
    %v1470 = vxor.u32 %v1463, 2147483648
    %v1471 = vmul.f32 %v1470, 1.442695
    %v1472 = vpow.pop %v1471
    %v1473 = vadd.f32 %v1472, 1.0
    %v1474 = vrcp.pop %v1473
    %v1475 = vmul.f32 1.0, %v1474
    %v1476 = vtanh.pop %v1384
    %v1477 = vtanh.pop %v1463
    %v1479 = vrot.slane %v1269, 6
    %v1481 = vmul.f32 %v1469, %v1479
    %1483 = vrot.lane.b32.xlu0 %v1476, 64
    %v1484 = vpop.permute.xlu0 %1483
    %v1486 = vmul.f32 %v1469, %v1484
    %1488 = vrot.lane.b32.xlu0 %v1486, 32
    %v1489 = vpop.permute.xlu0 %1488
    %v1491 = vadd.f32 %v1481, %v1489
    %v1493 = vrot.slane %v1283, 2
    %v1495 = vmul.f32 %v1475, %v1493
    %1497 = vrot.lane.b32.xlu0 %v1477, 64
    %v1498 = vpop.permute.xlu0 %1497
    %v1500 = vmul.f32 %v1475, %v1498
    %1502 = vrot.lane.b32.xlu0 %v1500, 32
    %v1503 = vpop.permute.xlu0 %1502
    %v1505 = vadd.f32 %v1495, %v1503
    %v1506 = vtanh.pop %v1491
    %1508 = vrot.lane.b32.xlu0 %v1506, 64
    %v1509 = vpop.permute.xlu0 %1508
    %v1511 = vmul.f32 %v1469, %v1509
    %v1512 = vtanh.pop %v1505
    %1514 = vrot.lane.b32.xlu0 %v1512, 64
    %v1515 = vpop.permute.xlu0 %1514
    %v1517 = vmul.f32 %v1475, %v1515
    %1519 = vrot.lane.b32.xlu0 %v1511, 32
    %v1520 = vpop.permute.xlu0 %1519
    %1522 = vst.msk [vmem:[#allocation2 + $0x8] sm:$0x30] %vm640, %v1520
    %1524 = vrot.lane.b32.xlu0 %v1517, 64
    %v1525 = vpop.permute.xlu0 %1524
    %1527 = vst.msk [vmem:[#allocation2] sm:$0xc] %vm646, %v1525
    %v1528 = vrot.slane %v1511, 4
    %1529 = vrot.lane.b32.xlu0 %v1528, 32
    %v1530 = vpop.permute.xlu0 %1529
    %v1531 = vsel %vm198, %v1530, 0
    %1533 = vmatprep.subr.mxu0 0.0
    %1534 = vmatpush1.msra.mxu0 %v142
    %1535 = vmatprep.subr.mxu0 0.0
    %1536 = vmatpush1.msra.mxu0 %v143
    %1537 = vmatprep.subr.mxu0 0.0
    %1538 = vmatpush1.msra.mxu0 %v144
    %1539 = vmatprep.subr.mxu0 0.0
    %1540 = vmatpush1.msra.mxu0 %v145
    %1541 = vmatprep.subr.mxu0 0.0
    %1542 = vmatpush1.msra.mxu0 0.0
    %1543 = vmatprep.subr.mxu0 0.0
    %1544 = vmatpush1.msra.mxu0 0.0
    %1545 = vmatprep.subr.mxu0 0.0
    %1546 = vmatpush1.msra.mxu0 0.0
    %1547 = vmatprep.subr.mxu0 0.0
    %1548 = vmatpush1.msra.mxu0 0.0
    %1549 = vmatprep.subr.mxu0 0.0
    %1550 = vmatpush1.msra.mxu0 0.0
    %1551 = vmatprep.subr.mxu0 0.0
    %1552 = vmatpush1.msra.mxu0 0.0
    %1553 = vmatprep.subr.mxu0 0.0
    %1554 = vmatpush1.msra.mxu0 0.0
    %1555 = vmatprep.subr.mxu0 0.0
    %1556 = vmatpush1.msra.mxu0 0.0
    %1557 = vmatprep.subr.mxu0 0.0
    %1558 = vmatpush1.msra.mxu0 0.0
    %1559 = vmatprep.subr.mxu0 0.0
    %1560 = vmatpush1.msra.mxu0 0.0
    %1561 = vmatprep.subr.mxu0 0.0
    %1562 = vmatpush1.msra.mxu0 0.0
    %1563 = vmatprep.subr.mxu0 0.0
    %1564 = vmatpush1.msra.mxu0 0.0
    %1565 = vmatprep.subr.mxu0 0.0
    %1566 = vmatpush1.msra.mxu0 0.0
    %1567 = vmatprep.subr.mxu0 0.0
    %1568 = vmatpush1.msra.mxu0 0.0
    %1569 = vmatprep.subr.mxu0 0.0
    %1570 = vmatpush1.msra.mxu0 0.0
    %1571 = vmatprep.subr.mxu0 0.0
    %1572 = vmatpush1.msra.mxu0 0.0
    %1573 = vmatprep.subr.mxu0 0.0
    %1574 = vmatpush1.msra.mxu0 0.0
    %1575 = vmatprep.subr.mxu0 0.0
    %1576 = vmatpush1.msra.mxu0 0.0
    %1577 = vmatprep.subr.mxu0 0.0
    %1578 = vmatpush1.msra.mxu0 0.0
    %1579 = vmatprep.subr.mxu0 0.0
    %1580 = vmatpush1.msra.mxu0 0.0
    %1581 = vmatprep.subr.mxu0 0.0
    %1582 = vmatpush1.msra.mxu0 0.0
    %1583 = vmatprep.subr.mxu0 0.0
    %1584 = vmatpush1.msra.mxu0 0.0
    %1585 = vmatprep.subr.mxu0 0.0
    %1586 = vmatpush1.msra.mxu0 0.0
    %1587 = vmatprep.subr.mxu0 0.0
    %1588 = vmatpush1.msra.mxu0 0.0
    %1589 = vmatprep.subr.mxu0 0.0
    %1590 = vmatpush1.msra.mxu0 0.0
    %1591 = vmatprep.subr.mxu0 0.0
    %1592 = vmatpush1.msra.mxu0 0.0
    %1593 = vmatprep.subr.mxu0 0.0
    %1594 = vmatpush1.msra.mxu0 0.0
    %1595 = vmatprep.subr.mxu0 0.0
    %1596 = vmatpush1.msra.mxu0 0.0
    %1597 = vmatprep.mubr.f32.mxu0 0.0
    %1598 = vmatmul.mubr.f32.gmra.mrb[0].mxu0 %v1531
    %v1599 = vpop.f32.mrb[0].mxu0
    %v1600 = vadd.f32 0.0, %v1599
    %v1601 = vpop.f32.mrb[0].mxu0
    %1602 = vdwg.mxu0
    %v1604 = vrot.slane %v1600, 2
    %v1606 = vadd.f32 %v138, %v1604
    %v1607 = vrot.slane %v1517, 2
    %1608 = vrot.lane.b32.xlu0 %v1607, 32
    %v1609 = vpop.permute.xlu0 %1608
    %v1610 = vsel %vm198, %v1609, 0
    %1612 = vmatprep.subr.mxu0 0.0
    %1613 = vmatpush1.msra.mxu0 %v146
    %1614 = vmatprep.subr.mxu0 0.0
    %1615 = vmatpush1.msra.mxu0 %v147
    %1616 = vmatprep.subr.mxu0 0.0
    %1617 = vmatpush1.msra.mxu0 %v148
    %1618 = vmatprep.subr.mxu0 0.0
    %1619 = vmatpush1.msra.mxu0 %v149
    %1620 = vmatprep.subr.mxu0 0.0
    %1621 = vmatpush1.msra.mxu0 0.0
    %1622 = vmatprep.subr.mxu0 0.0
    %1623 = vmatpush1.msra.mxu0 0.0
    %1624 = vmatprep.subr.mxu0 0.0
    %1625 = vmatpush1.msra.mxu0 0.0
    %1626 = vmatprep.subr.mxu0 0.0
    %1627 = vmatpush1.msra.mxu0 0.0
    %1628 = vmatprep.subr.mxu0 0.0
    %1629 = vmatpush1.msra.mxu0 0.0
    %1630 = vmatprep.subr.mxu0 0.0
    %1631 = vmatpush1.msra.mxu0 0.0
    %1632 = vmatprep.subr.mxu0 0.0
    %1633 = vmatpush1.msra.mxu0 0.0
    %1634 = vmatprep.subr.mxu0 0.0
    %1635 = vmatpush1.msra.mxu0 0.0
    %1636 = vmatprep.subr.mxu0 0.0
    %1637 = vmatpush1.msra.mxu0 0.0
    %1638 = vmatprep.subr.mxu0 0.0
    %1639 = vmatpush1.msra.mxu0 0.0
    %1640 = vmatprep.subr.mxu0 0.0
    %1641 = vmatpush1.msra.mxu0 0.0
    %1642 = vmatprep.subr.mxu0 0.0
    %1643 = vmatpush1.msra.mxu0 0.0
    %1644 = vmatprep.subr.mxu0 0.0
    %1645 = vmatpush1.msra.mxu0 0.0
    %1646 = vmatprep.subr.mxu0 0.0
    %1647 = vmatpush1.msra.mxu0 0.0
    %1648 = vmatprep.subr.mxu0 0.0
    %1649 = vmatpush1.msra.mxu0 0.0
    %1650 = vmatprep.subr.mxu0 0.0
    %1651 = vmatpush1.msra.mxu0 0.0
    %1652 = vmatprep.subr.mxu0 0.0
    %1653 = vmatpush1.msra.mxu0 0.0
    %1654 = vmatprep.subr.mxu0 0.0
    %1655 = vmatpush1.msra.mxu0 0.0
    %1656 = vmatprep.subr.mxu0 0.0
    %1657 = vmatpush1.msra.mxu0 0.0
    %1658 = vmatprep.subr.mxu0 0.0
    %1659 = vmatpush1.msra.mxu0 0.0
    %1660 = vmatprep.subr.mxu0 0.0
    %1661 = vmatpush1.msra.mxu0 0.0
    %1662 = vmatprep.subr.mxu0 0.0
    %1663 = vmatpush1.msra.mxu0 0.0
    %1664 = vmatprep.subr.mxu0 0.0
    %1665 = vmatpush1.msra.mxu0 0.0
    %1666 = vmatprep.subr.mxu0 0.0
    %1667 = vmatpush1.msra.mxu0 0.0
    %1668 = vmatprep.subr.mxu0 0.0
    %1669 = vmatpush1.msra.mxu0 0.0
    %1670 = vmatprep.subr.mxu0 0.0
    %1671 = vmatpush1.msra.mxu0 0.0
    %1672 = vmatprep.subr.mxu0 0.0
    %1673 = vmatpush1.msra.mxu0 0.0
    %1674 = vmatprep.subr.mxu0 0.0
    %1675 = vmatpush1.msra.mxu0 0.0
    %1676 = vmatprep.mubr.f32.mxu0 0.0
    %1677 = vmatmul.mubr.f32.gmra.mrb[0].mxu0 %v1610
    %v1678 = vpop.f32.mrb[0].mxu0
    %v1679 = vadd.f32 0.0, %v1678
    %v1680 = vpop.f32.mrb[0].mxu0
    %1681 = vdwg.mxu0
    %v1682 = vadd.f32 %v134, %v1679
    %v1683 = vxor.u32 %v1606, 2147483648
    %v1684 = vmul.f32 %v1683, 1.442695
    %v1685 = vpow.pop %v1684
    %v1686 = vadd.f32 %v1685, 1.0
    %v1687 = vrcp.pop %v1686
    %v1688 = vmul.f32 1.0, %v1687
    %v1689 = vxor.u32 %v1682, 2147483648
    %v1690 = vmul.f32 %v1689, 1.442695
    %v1691 = vpow.pop %v1690
    %v1692 = vadd.f32 %v1691, 1.0
    %v1693 = vrcp.pop %v1692
    %v1694 = vmul.f32 1.0, %v1693
    %v1695 = vtanh.pop %v1606
    %v1696 = vtanh.pop %v1682
    %v1698 = vrot.slane %v1491, 6
    %v1700 = vmul.f32 %v1688, %v1698
    %1702 = vrot.lane.b32.xlu0 %v1695, 64
    %v1703 = vpop.permute.xlu0 %1702
    %v1705 = vmul.f32 %v1688, %v1703
    %1707 = vrot.lane.b32.xlu0 %v1705, 32
    %v1708 = vpop.permute.xlu0 %1707
    %v1710 = vadd.f32 %v1700, %v1708
    %v1712 = vrot.slane %v1505, 2
    %v1714 = vmul.f32 %v1694, %v1712
    %1716 = vrot.lane.b32.xlu0 %v1696, 64
    %v1717 = vpop.permute.xlu0 %1716
    %v1719 = vmul.f32 %v1694, %v1717
    %1721 = vrot.lane.b32.xlu0 %v1719, 32
    %v1722 = vpop.permute.xlu0 %1721
    %v1724 = vadd.f32 %v1714, %v1722
    %v1725 = vtanh.pop %v1710
    %1727 = vrot.lane.b32.xlu0 %v1725, 64
    %v1728 = vpop.permute.xlu0 %1727
    %v1730 = vmul.f32 %v1688, %v1728
    %v1731 = vtanh.pop %v1724
    %1733 = vrot.lane.b32.xlu0 %v1731, 64
    %v1734 = vpop.permute.xlu0 %1733
    %v1736 = vmul.f32 %v1694, %v1734
    %1738 = vrot.lane.b32.xlu0 %v1730, 32
    %v1739 = vpop.permute.xlu0 %1738
    %1741 = vst.msk [vmem:[#allocation2 + $0x8] sm:$0xc0] %vm861, %v1739
    %1743 = vrot.lane.b32.xlu0 %v1736, 64
    %v1744 = vpop.permute.xlu0 %1743
    %1746 = vst.msk [vmem:[#allocation2] sm:$0x3] %vm867, %v1744
    %v1747 = vld [vmem:[#allocation2] sm:$0xff]
    %v1748 = vld [vmem:[#allocation2 + $0x8] sm:$0xff]
    %v1749 = vld [vmem:[%s5] sm:$0xff]
    %v1750 = vld [vmem:[%s5 + $0x8] sm:$0xff]
    %v1751 = vld [vmem:[%s5 + $0x10] sm:$0xff]
    %v1752 = vld [vmem:[%s5 + $0x18] sm:$0xff]
    %v1753 = vld [vmem:[%s5 + $0x20] sm:$0xff]
    %v1754 = vld [vmem:[%s5 + $0x28] sm:$0xff]
    %v1755 = vld [vmem:[%s5 + $0x30] sm:$0xff]
    %v1756 = vld [vmem:[%s5 + $0x38] sm:$0xff]
    %v1757 = vld [vmem:[%s6] sm:$0x1]
    %v1759 = vlaneseq
    %v1760 = vshrl.u32 %v1759, 7
    %v1761 = vsub.s32 0, %v1760
    %v1762 = vrot.slane %v1757, %v1761
    %vm1764 = vcmask 523264
    %v1766 = vsel %vm1764, %v1747, 0
    %v1769 = vsel %vm1764, %v1748, 0
    %1771 = vmatprep.subr.mxu0 0.0
    %1772 = vmatpush1.msra.mxu0 %v1749
    %1773 = vmatprep.subr.mxu0 0.0
    %1774 = vmatpush1.msra.mxu0 %v1750
    %1775 = vmatprep.subr.mxu0 0.0
    %1776 = vmatpush1.msra.mxu0 %v1751
    %1777 = vmatprep.subr.mxu0 0.0
    %1778 = vmatpush1.msra.mxu0 %v1752
    %1779 = vmatprep.subr.mxu0 0.0
    %1780 = vmatpush1.msra.mxu0 %v1753
    %1781 = vmatprep.subr.mxu0 0.0
    %1782 = vmatpush1.msra.mxu0 %v1754
    %1783 = vmatprep.subr.mxu0 0.0
    %1784 = vmatpush1.msra.mxu0 %v1755
    %1785 = vmatprep.subr.mxu0 0.0
    %1786 = vmatpush1.msra.mxu0 %v1756
    %1787 = vmatprep.subr.mxu0 0.0
    %1788 = vmatpush1.msra.mxu0 0.0
    %1789 = vmatprep.subr.mxu0 0.0
    %1790 = vmatpush1.msra.mxu0 0.0
    %1791 = vmatprep.subr.mxu0 0.0
    %1792 = vmatpush1.msra.mxu0 0.0
    %1793 = vmatprep.subr.mxu0 0.0
    %1794 = vmatpush1.msra.mxu0 0.0
    %1795 = vmatprep.subr.mxu0 0.0
    %1796 = vmatpush1.msra.mxu0 0.0
    %1797 = vmatprep.subr.mxu0 0.0
    %1798 = vmatpush1.msra.mxu0 0.0
    %1799 = vmatprep.subr.mxu0 0.0
    %1800 = vmatpush1.msra.mxu0 0.0
    %1801 = vmatprep.subr.mxu0 0.0
    %1802 = vmatpush1.msra.mxu0 0.0
    %1803 = vmatprep.subr.mxu0 0.0
    %1804 = vmatpush1.msra.mxu0 0.0
    %1805 = vmatprep.subr.mxu0 0.0
    %1806 = vmatpush1.msra.mxu0 0.0
    %1807 = vmatprep.subr.mxu0 0.0
    %1808 = vmatpush1.msra.mxu0 0.0
    %1809 = vmatprep.subr.mxu0 0.0
    %1810 = vmatpush1.msra.mxu0 0.0
    %1811 = vmatprep.subr.mxu0 0.0
    %1812 = vmatpush1.msra.mxu0 0.0
    %1813 = vmatprep.subr.mxu0 0.0
    %1814 = vmatpush1.msra.mxu0 0.0
    %1815 = vmatprep.subr.mxu0 0.0
    %1816 = vmatpush1.msra.mxu0 0.0
    %1817 = vmatprep.subr.mxu0 0.0
    %1818 = vmatpush1.msra.mxu0 0.0
    %1819 = vmatprep.subr.mxu0 0.0
    %1820 = vmatpush1.msra.mxu0 0.0
    %1821 = vmatprep.subr.mxu0 0.0
    %1822 = vmatpush1.msra.mxu0 0.0
    %1823 = vmatprep.subr.mxu0 0.0
    %1824 = vmatpush1.msra.mxu0 0.0
    %1825 = vmatprep.subr.mxu0 0.0
    %1826 = vmatpush1.msra.mxu0 0.0
    %1827 = vmatprep.subr.mxu0 0.0
    %1828 = vmatpush1.msra.mxu0 0.0
    %1829 = vmatprep.subr.mxu0 0.0
    %1830 = vmatpush1.msra.mxu0 0.0
    %1831 = vmatprep.subr.mxu0 0.0
    %1832 = vmatpush1.msra.mxu0 0.0
    %1833 = vmatprep.subr.mxu0 0.0
    %1834 = vmatpush1.msra.mxu0 0.0
    %1835 = vmatprep.mubr.f32.mxu0 0.0
    %1836 = vmatmul.mubr.f32.gmra.mrb[0].mxu0 %v1766
    %v1837 = vpop.f32.mrb[0].mxu0
    %v1838 = vadd.f32 %v1762, %v1837
    %v1839 = vpop.f32.mrb[0].mxu0
    %1840 = vmatprep.mubr.f32.mxu0 0.0
    %1841 = vmatmul.mubr.f32.gmra.mrb[0].mxu0 %v1769
    %v1842 = vpop.f32.mrb[0].mxu0
    %v1843 = vadd.f32 %v1762, %v1842
    %v1844 = vpop.f32.mrb[0].mxu0
    %1845 = vdwg.mxu0
    %1846 = vst.msk [vmem:[%s7] sm:$0xff] %vm58, %v1838
    %1847 = vst.msk [vmem:[%s7 + $0x8] sm:$0xff] %vm58, %v1843
    // Predicated region
    $region34: #{_lambda_.1} parent=1 // pred_check
      _
    $region35: #{_lambda_.1} parent=1 // pred_check_branch
      %1849 = sbr.rel (0) target = $region37
    $region36: #{_lambda_.1} parent=1 // pred_region
      _
    $region37: #{_lambda_.1} parent=1 // pred_fallthru
      _
    // Predicated region
    $region38: #{_lambda_.1} parent=1 // pred_check
      _
    $region39: #{_lambda_.1} parent=1 // pred_check_branch
      %1851 = sbr.rel (0) target = $region41
    $region40: #{_lambda_.1} parent=1 // pred_region
      _
    $region41: #{_lambda_.1} parent=1 // pred_fallthru
      _
    %1852 = vsyncpa [#allocation4], 1

</llo_original>
